<compile_context>
chip_gen: v5e
topology: v5e:2x2
jax: 0.10.0
libtpu: 0.0.40
codegen_flags: <defaults>
</compile_context>

<pallas_src>
import jax
import jax.numpy as jnp
from jax.experimental import pallas as pl
from jax.experimental.pallas import tpu as pltpu

NUM_HEADS = 4
LN_EPS = 1e-5


def _layer_norm(x, w, b):
    mu = jnp.mean(x, axis=-1, keepdims=True)
    var = jnp.mean((x - mu) ** 2, axis=-1, keepdims=True)
    return (x - mu) * jax.lax.rsqrt(var + LN_EPS) * w + b


def _softmax_lastdim(s):
    m = jnp.max(s, axis=-1, keepdims=True)
    e = jnp.exp(s - m)
    # normalization on the EUP (approx reciprocal) instead of a VALU divide;
    # rows sum to 1 only to ~1e-3 (documented deviation from exact softmax).
    return e * pl.reciprocal(jnp.sum(e, axis=-1, keepdims=True), approx=True)


def _gelu_exact(x):
    # matches nn.GELU() default (erf-based, approximate='none').
    # TODO(synk): optionally switch to the tanh approximation (runs on the EUP slot)
    # if bit-faithfulness to the erf GELU is not required.
    return 0.5 * x * (1.0 + jax.lax.erf(x * (1.0 / jnp.sqrt(2.0).astype(x.dtype))))


def _self_attention_kernel(x_ref, wqkv_ref, bqkv_ref, wo_ref, bo_ref,
                           ln1w_ref, ln1b_ref, ln2w_ref, ln2b_ref,
                           w1_ref, b1_ref, w2_ref, b2_ref, o_ref):
    _, C, S = x_ref.shape
    H = NUM_HEADS
    dh = C // H
    bf16 = jnp.bfloat16
    f32 = jnp.float32

    # (C, S) feature-major input block -> token-major (S, C); single 2-D transpose.
    x_tok = x_ref[0].T                                                  # (S, C) f32

    # ---- pre-attention LayerNorm (f32) ----
    x_ln = _layer_norm(x_tok, ln1w_ref[...], ln1b_ref[...])             # (S, C)
    x_ln_bf = x_ln.astype(bf16)

    # ---- fused QKV projection: ONE (S, C) @ (C, 3C->128) MXU matmul.
    #      Columns are [q(C) | k(C) | v(C) | zero-pad], head-contiguous inside each
    #      section; the 1/sqrt(dh) scale is folded into the q columns and bias. ----
    qkv = jnp.dot(x_ln_bf, wqkv_ref[...], preferred_element_type=f32) + bqkv_ref[...]

    q = qkv[:, 0 * C:1 * C]                                             # (S, C)
    v = qkv[:, 2 * C:3 * C]                                             # (S, C)
    # K transposed once; per-head K^T slices become contiguous sublane groups,
    # so the score matmul needs no per-head transposes.
    kT_g = qkv[:, 1 * C:2 * C].T.reshape(H, dh, S)                      # (H, dh, S)
    q_g = jnp.stack([q[:, h * dh:(h + 1) * dh] for h in range(H)], axis=0)  # (H, S, dh)
    v_g = jnp.stack([v[:, h * dh:(h + 1) * dh] for h in range(H)], axis=0)  # (H, S, dh)

    # ---- attention core (head-batched, bf16 MXU operands, f32 accumulation) ----
    s = jnp.einsum('gqd,gdk->gqk', q_g.astype(bf16), kT_g.astype(bf16),
                   preferred_element_type=f32)                          # (H, S, S)
    p = _softmax_lastdim(s)                                             # f32
    o_g = jnp.einsum('gqk,gkd->gqd', p.astype(bf16), v_g.astype(bf16),
                     preferred_element_type=f32)                        # (H, S, dh)

    # ---- output projection: concat heads -> (S, C), ONE (S, C) @ (C, C) matmul ----
    o_cat = jnp.concatenate([o_g[h] for h in range(H)], axis=-1)        # (S, C) f32
    attn = jnp.dot(o_cat.astype(bf16), wo_ref[...],
                   preferred_element_type=f32) + bo_ref[...]            # (S, C)
    attn = attn + x_tok                                                 # residual 1

    # ---- feed-forward: LN -> Linear -> GELU -> Linear, + residual ----
    h1 = _layer_norm(attn, ln2w_ref[...], ln2b_ref[...])
    h1 = jnp.dot(h1.astype(bf16), w1_ref[...], preferred_element_type=f32) + b1_ref[...]
    h1 = _gelu_exact(h1)
    h1 = jnp.dot(h1.astype(bf16), w2_ref[...], preferred_element_type=f32) + b2_ref[...]
    out_tok = h1 + attn                                                 # (S, C) f32

    # store feature-major (C, S): matches the (B, C, S) output (no wrapper transpose)
    # and keeps S (the larger dim) on the lane axis.
    o_ref[...] = out_tok.T[None, :, :]


def self_attention(x_nchw, params):
    """x_nchw: (B, C, H, W) float32 -> (B, C, H, W) float32."""
    B, C, Hs, Ws = x_nchw.shape
    S = Hs * Ws
    dh = C // NUM_HEADS
    scale = 1.0 / float(dh) ** 0.5
    bf16 = jnp.bfloat16
    f32 = jnp.float32

    # NCHW -> (B, C, S) is a pure reshape: no HBM transpose pass on input or output.
    x_cs = x_nchw.reshape(B, C, S)

    # --- one-time weight re-layout (plain XLA, outside the kernel) ---
    pad = (-(3 * C)) % 128  # pad fused QKV columns to a 128-lane multiple
    wqkv = jnp.concatenate([params["wq"] * scale, params["wk"], params["wv"]], axis=1)
    wqkv = jnp.pad(wqkv, ((0, 0), (0, pad))).astype(bf16)               # (C, 3C+pad)
    bqkv = jnp.concatenate([params["bq"] * scale, params["bk"], params["bv"]], axis=1)
    bqkv = jnp.pad(bqkv, ((0, 0), (0, pad))).astype(f32)                # (1, 3C+pad)

    weights = [
        wqkv, bqkv,
        params["wo"].astype(bf16), params["bo"].astype(f32),
        params["ln_w"].astype(f32), params["ln_b"].astype(f32),
        params["ln2_w"].astype(f32), params["ln2_b"].astype(f32),
        params["w1"].astype(bf16), params["b1"].astype(f32),
        params["w2"].astype(bf16), params["b2"].astype(f32),
    ]

    def _rep_spec(shape):
        n = len(shape)
        return pl.BlockSpec(shape, lambda b, _n=n: (0,) * _n)

    out = pl.pallas_call(
        _self_attention_kernel,
        out_shape=jax.ShapeDtypeStruct((B, C, S), jnp.float32),
        grid=(B,),                              # one batch per grid step
        in_specs=[pl.BlockSpec((1, C, S), lambda b: (b, 0, 0))]
                 + [_rep_spec(w.shape) for w in weights],
        out_specs=pl.BlockSpec((1, C, S), lambda b: (b, 0, 0)),
        compiler_params=pltpu.CompilerParams(
            dimension_semantics=("parallel",)),  # shards batches across v7x's 2 TCs
    )(x_cs, *weights)

    return out.reshape(B, C, Hs, Ws)


def init_params(key, channels):
    """Deterministic synthetic parameters with the same shapes/semantics as the
    PyTorch module (weight matrices are stored pre-transposed for `x @ W`)."""
    C = channels
    ks = jax.random.split(key, 12)
    nrm = lambda k, shp: (0.02 * jax.random.normal(k, shp)).astype(jnp.float32)
    return {
        # pre-attention LayerNorm (PyTorch default init: ones / zeros)
        "ln_w": jnp.ones((1, C), jnp.float32),
        "ln_b": jnp.zeros((1, C), jnp.float32),
        # MHA in-projection (q/k/v) and out-projection
        "wq": nrm(ks[0], (C, C)), "wk": nrm(ks[1], (C, C)), "wv": nrm(ks[2], (C, C)),
        "bq": nrm(ks[3], (1, C)), "bk": nrm(ks[4], (1, C)), "bv": nrm(ks[5], (1, C)),
        "wo": nrm(ks[6], (C, C)), "bo": nrm(ks[7], (1, C)),
        # ff_self: LayerNorm, Linear, GELU, Linear
        "ln2_w": jnp.ones((1, C), jnp.float32),
        "ln2_b": jnp.zeros((1, C), jnp.float32),
        "w1": nrm(ks[8], (C, C)), "b1": nrm(ks[9], (1, C)),
        "w2": nrm(ks[10], (C, C)), "b2": nrm(ks[11], (1, C)),
    }


if __name__ == "__main__":
    B, C, H, W = 2, 32, 8, 8          # channels must be divisible by num_heads=4
    key = jax.random.PRNGKey(0)
    k_x, k_p = jax.random.split(key)
    x = jax.random.normal(k_x, (B, C, H, W), dtype=jnp.float32)
    params = init_params(k_p, C)

    y = self_attention(x, params)
    jax.block_until_ready(y)
    assert y.shape == (B, C, H, W)
    assert bool(jnp.all(jnp.isfinite(y)))
    print("KERNEL_OK")
</pallas_src>

<mosaic_0001>
module attributes {stable_mosaic.version = 11 : i64} {
  func.func @_self_attention_kernel(%arg0: i32, %arg1: memref<1x32x64xf32, #tpu.memory_space<vmem>>, %arg2: memref<32x128xbf16, #tpu.memory_space<vmem>>, %arg3: memref<1x128xf32, #tpu.memory_space<vmem>>, %arg4: memref<32x32xbf16, #tpu.memory_space<vmem>>, %arg5: memref<1x32xf32, #tpu.memory_space<vmem>>, %arg6: memref<1x32xf32, #tpu.memory_space<vmem>>, %arg7: memref<1x32xf32, #tpu.memory_space<vmem>>, %arg8: memref<1x32xf32, #tpu.memory_space<vmem>>, %arg9: memref<1x32xf32, #tpu.memory_space<vmem>>, %arg10: memref<32x32xbf16, #tpu.memory_space<vmem>>, %arg11: memref<1x32xf32, #tpu.memory_space<vmem>>, %arg12: memref<32x32xbf16, #tpu.memory_space<vmem>>, %arg13: memref<1x32xf32, #tpu.memory_space<vmem>>, %arg14: memref<1x32x64xf32, #tpu.memory_space<vmem>>) attributes {dimension_semantics = [#tpu.dimension_semantics<parallel>], iteration_bounds = array<i64: 2>, scalar_prefetch = 0 : i64, scratch_operands = 0 : i64, tpu.core_type = #tpu.core_type<tc>, window_params = [{transform_indices = @transform_0, window_bounds = array<i64: 1, 32, 64>}, {pipeline_mode = #tpu.pipeline_mode<synchronous>, transform_indices = @transform_1, window_bounds = array<i64: 32, 128>}, {pipeline_mode = #tpu.pipeline_mode<synchronous>, transform_indices = @transform_2, window_bounds = array<i64: 1, 128>}, {pipeline_mode = #tpu.pipeline_mode<synchronous>, transform_indices = @transform_3, window_bounds = array<i64: 32, 32>}, {pipeline_mode = #tpu.pipeline_mode<synchronous>, transform_indices = @transform_4, window_bounds = array<i64: 1, 32>}, {pipeline_mode = #tpu.pipeline_mode<synchronous>, transform_indices = @transform_5, window_bounds = array<i64: 1, 32>}, {pipeline_mode = #tpu.pipeline_mode<synchronous>, transform_indices = @transform_6, window_bounds = array<i64: 1, 32>}, {pipeline_mode = #tpu.pipeline_mode<synchronous>, transform_indices = @transform_7, window_bounds = array<i64: 1, 32>}, {pipeline_mode = #tpu.pipeline_mode<synchronous>, transform_indices = @transform_8, window_bounds = array<i64: 1, 32>}, {pipeline_mode = #tpu.pipeline_mode<synchronous>, transform_indices = @transform_9, window_bounds = array<i64: 32, 32>}, {pipeline_mode = #tpu.pipeline_mode<synchronous>, transform_indices = @transform_10, window_bounds = array<i64: 1, 32>}, {pipeline_mode = #tpu.pipeline_mode<synchronous>, transform_indices = @transform_11, window_bounds = array<i64: 32, 32>}, {pipeline_mode = #tpu.pipeline_mode<synchronous>, transform_indices = @transform_12, window_bounds = array<i64: 1, 32>}, {transform_indices = @transform_13, window_bounds = array<i64: 1, 32, 64>}]} {
    %c0 = arith.constant 0 : index
    %c0_0 = arith.constant 0 : index
    %c0_1 = arith.constant 0 : index
    %0 = vector.load %arg1[%c0, %c0_0, %c0_1] : memref<1x32x64xf32, #tpu.memory_space<vmem>>, vector<1x32x64xf32>
    %1 = vector.shape_cast %0 : vector<1x32x64xf32> to vector<32x64xf32>
    %2 = tpu.transpose %1, [1, 0] : vector<32x64xf32> -> vector<64x32xf32>
    %c0_2 = arith.constant 0 : index
    %c0_3 = arith.constant 0 : index
    %3 = vector.load %arg6[%c0_2, %c0_3] : memref<1x32xf32, #tpu.memory_space<vmem>>, vector<1x32xf32>
    %c0_4 = arith.constant 0 : index
    %c0_5 = arith.constant 0 : index
    %4 = vector.load %arg7[%c0_4, %c0_5] : memref<1x32xf32, #tpu.memory_space<vmem>>, vector<1x32xf32>
    %cst = arith.constant dense<0.000000e+00> : vector<64xf32>
    %5 = vector.multi_reduction <add>, %2, %cst [1] : vector<64x32xf32> to vector<64xf32>
    %6 = vector.shape_cast %5 : vector<64xf32> to vector<64x1xf32>
    %cst_6 = arith.constant 3.200000e+01 : f32
    %7 = vector.broadcast %cst_6 : f32 to vector<64x1xf32>
    %8 = arith.divf %6, %7 : vector<64x1xf32>
    %9 = vector.broadcast %8 : vector<64x1xf32> to vector<64x32xf32>
    %10 = arith.subf %2, %9 : vector<64x32xf32>
    %11 = arith.mulf %10, %10 : vector<64x32xf32>
    %cst_7 = arith.constant dense<0.000000e+00> : vector<64xf32>
    %12 = vector.multi_reduction <add>, %11, %cst_7 [1] : vector<64x32xf32> to vector<64xf32>
    %13 = vector.shape_cast %12 : vector<64xf32> to vector<64x1xf32>
    %cst_8 = arith.constant 3.200000e+01 : f32
    %14 = vector.broadcast %cst_8 : f32 to vector<64x1xf32>
    %15 = arith.divf %13, %14 : vector<64x1xf32>
    %16 = vector.broadcast %8 : vector<64x1xf32> to vector<64x32xf32>
    %17 = arith.subf %2, %16 : vector<64x32xf32>
    %cst_9 = arith.constant 9.99999974E-6 : f32
    %18 = vector.broadcast %cst_9 : f32 to vector<64x1xf32>
    %19 = arith.addf %15, %18 : vector<64x1xf32>
    %20 = math.rsqrt %19 : vector<64x1xf32>
    %21 = vector.broadcast %20 : vector<64x1xf32> to vector<64x32xf32>
    %22 = arith.mulf %17, %21 : vector<64x32xf32>
    %23 = vector.broadcast %3 : vector<1x32xf32> to vector<64x32xf32>
    %24 = arith.mulf %22, %23 : vector<64x32xf32>
    %25 = vector.broadcast %4 : vector<1x32xf32> to vector<64x32xf32>
    %26 = arith.addf %24, %25 : vector<64x32xf32>
    %27 = arith.truncf %26 : vector<64x32xf32> to vector<64x32xbf16>
    %c0_10 = arith.constant 0 : index
    %c0_11 = arith.constant 0 : index
    %28 = vector.load %arg2[%c0_10, %c0_11] : memref<32x128xbf16, #tpu.memory_space<vmem>>, vector<32x128xbf16>
    %cst_12 = arith.constant dense<0.000000e+00> : vector<64x128xf32>
    %29 = tpu.matmul %27, %28, %cst_12 {dimension_numbers = #tpu.dot_dimension_numbers<[1], [0], [0], [1], [0, 0, 1, 1], [], []>} : vector<64x32xbf16>, vector<32x128xbf16>, vector<64x128xf32> -> vector<64x128xf32>
    %c0_13 = arith.constant 0 : index
    %c0_14 = arith.constant 0 : index
    %30 = vector.load %arg3[%c0_13, %c0_14] : memref<1x128xf32, #tpu.memory_space<vmem>>, vector<1x128xf32>
    %31 = vector.broadcast %30 : vector<1x128xf32> to vector<64x128xf32>
    %32 = arith.addf %29, %31 : vector<64x128xf32>
    %33 = vector.extract_strided_slice %32 {offsets = [0, 0], sizes = [64, 32], strides = [1, 1]} : vector<64x128xf32> to vector<64x32xf32>
    %34 = vector.extract_strided_slice %32 {offsets = [0, 64], sizes = [64, 32], strides = [1, 1]} : vector<64x128xf32> to vector<64x32xf32>
    %35 = vector.extract_strided_slice %32 {offsets = [0, 32], sizes = [64, 32], strides = [1, 1]} : vector<64x128xf32> to vector<64x32xf32>
    %36 = tpu.transpose %35, [1, 0] : vector<64x32xf32> -> vector<32x64xf32>
    %37 = vector.shape_cast %36 : vector<32x64xf32> to vector<4x8x64xf32>
    %38 = vector.extract_strided_slice %33 {offsets = [0, 0], sizes = [64, 8], strides = [1, 1]} : vector<64x32xf32> to vector<64x8xf32>
    %39 = vector.extract_strided_slice %33 {offsets = [0, 8], sizes = [64, 8], strides = [1, 1]} : vector<64x32xf32> to vector<64x8xf32>
    %40 = vector.extract_strided_slice %33 {offsets = [0, 16], sizes = [64, 8], strides = [1, 1]} : vector<64x32xf32> to vector<64x8xf32>
    %41 = vector.extract_strided_slice %33 {offsets = [0, 24], sizes = [64, 8], strides = [1, 1]} : vector<64x32xf32> to vector<64x8xf32>
    %42 = vector.shape_cast %38 : vector<64x8xf32> to vector<1x64x8xf32>
    %43 = vector.shape_cast %39 : vector<64x8xf32> to vector<1x64x8xf32>
    %44 = vector.shape_cast %40 : vector<64x8xf32> to vector<1x64x8xf32>
    %45 = vector.shape_cast %41 : vector<64x8xf32> to vector<1x64x8xf32>
    %46 = tpu.concatenate %42, %43, %44, %45 in 0 : vector<1x64x8xf32>, vector<1x64x8xf32>, vector<1x64x8xf32>, vector<1x64x8xf32> -> vector<4x64x8xf32>
    %47 = vector.extract_strided_slice %34 {offsets = [0, 0], sizes = [64, 8], strides = [1, 1]} : vector<64x32xf32> to vector<64x8xf32>
    %48 = vector.extract_strided_slice %34 {offsets = [0, 8], sizes = [64, 8], strides = [1, 1]} : vector<64x32xf32> to vector<64x8xf32>
    %49 = vector.extract_strided_slice %34 {offsets = [0, 16], sizes = [64, 8], strides = [1, 1]} : vector<64x32xf32> to vector<64x8xf32>
    %50 = vector.extract_strided_slice %34 {offsets = [0, 24], sizes = [64, 8], strides = [1, 1]} : vector<64x32xf32> to vector<64x8xf32>
    %51 = vector.shape_cast %47 : vector<64x8xf32> to vector<1x64x8xf32>
    %52 = vector.shape_cast %48 : vector<64x8xf32> to vector<1x64x8xf32>
    %53 = vector.shape_cast %49 : vector<64x8xf32> to vector<1x64x8xf32>
    %54 = vector.shape_cast %50 : vector<64x8xf32> to vector<1x64x8xf32>
    %55 = tpu.concatenate %51, %52, %53, %54 in 0 : vector<1x64x8xf32>, vector<1x64x8xf32>, vector<1x64x8xf32>, vector<1x64x8xf32> -> vector<4x64x8xf32>
    %56 = arith.truncf %46 : vector<4x64x8xf32> to vector<4x64x8xbf16>
    %57 = arith.truncf %37 : vector<4x8x64xf32> to vector<4x8x64xbf16>
    "tpu.trace_start"() <{level = 10 : i32, message = "gqd,gdk->gqk"}> : () -> ()
    %cst_15 = arith.constant dense<0.000000e+00> : vector<4x64x64xf32>
    %58 = tpu.matmul %56, %57, %cst_15 {dimension_numbers = #tpu.dot_dimension_numbers<[2], [1], [1], [2], [0, 0, 0, 1, 1, 2], [0], [0]>} : vector<4x64x8xbf16>, vector<4x8x64xbf16>, vector<4x64x64xf32> -> vector<4x64x64xf32>
    "tpu.trace_stop"() : () -> ()
    %cst_16 = arith.constant dense<0xFF800000> : vector<4x64xf32>
    %59 = vector.multi_reduction <maximumf>, %58, %cst_16 [2] : vector<4x64x64xf32> to vector<4x64xf32>
    %60 = vector.shape_cast %59 : vector<4x64xf32> to vector<4x64x1xf32>
    %61 = vector.broadcast %60 : vector<4x64x1xf32> to vector<4x64x64xf32>
    %62 = arith.subf %58, %61 : vector<4x64x64xf32>
    %63 = math.exp %62 : vector<4x64x64xf32>
    %cst_17 = arith.constant dense<0.000000e+00> : vector<4x64xf32>
    %64 = vector.multi_reduction <add>, %63, %cst_17 [2] : vector<4x64x64xf32> to vector<4x64xf32>
    %65 = vector.shape_cast %64 : vector<4x64xf32> to vector<4x64x1xf32>
    %66 = tpu.reciprocal %65 {approx = true} : vector<4x64x1xf32> -> vector<4x64x1xf32>
    %67 = vector.broadcast %66 : vector<4x64x1xf32> to vector<4x64x64xf32>
    %68 = arith.mulf %63, %67 : vector<4x64x64xf32>
    %69 = arith.truncf %68 : vector<4x64x64xf32> to vector<4x64x64xbf16>
    %70 = arith.truncf %55 : vector<4x64x8xf32> to vector<4x64x8xbf16>
    "tpu.trace_start"() <{level = 10 : i32, message = "gqk,gkd->gqd"}> : () -> ()
    %cst_18 = arith.constant dense<0.000000e+00> : vector<4x64x8xf32>
    %71 = tpu.matmul %69, %70, %cst_18 {dimension_numbers = #tpu.dot_dimension_numbers<[2], [1], [1], [2], [0, 0, 0, 1, 1, 2], [0], [0]>} : vector<4x64x64xbf16>, vector<4x64x8xbf16>, vector<4x64x8xf32> -> vector<4x64x8xf32>
    "tpu.trace_stop"() : () -> ()
    %72 = vector.extract_strided_slice %71 {offsets = [0, 0, 0], sizes = [1, 64, 8], strides = [1, 1, 1]} : vector<4x64x8xf32> to vector<1x64x8xf32>
    %73 = vector.shape_cast %72 : vector<1x64x8xf32> to vector<64x8xf32>
    %74 = vector.extract_strided_slice %71 {offsets = [1, 0, 0], sizes = [1, 64, 8], strides = [1, 1, 1]} : vector<4x64x8xf32> to vector<1x64x8xf32>
    %75 = vector.shape_cast %74 : vector<1x64x8xf32> to vector<64x8xf32>
    %76 = vector.extract_strided_slice %71 {offsets = [2, 0, 0], sizes = [1, 64, 8], strides = [1, 1, 1]} : vector<4x64x8xf32> to vector<1x64x8xf32>
    %77 = vector.shape_cast %76 : vector<1x64x8xf32> to vector<64x8xf32>
    %78 = vector.extract_strided_slice %71 {offsets = [3, 0, 0], sizes = [1, 64, 8], strides = [1, 1, 1]} : vector<4x64x8xf32> to vector<1x64x8xf32>
    %79 = vector.shape_cast %78 : vector<1x64x8xf32> to vector<64x8xf32>
    %80 = tpu.concatenate %73, %75, %77, %79 in 1 : vector<64x8xf32>, vector<64x8xf32>, vector<64x8xf32>, vector<64x8xf32> -> vector<64x32xf32>
    %81 = arith.truncf %80 : vector<64x32xf32> to vector<64x32xbf16>
    %c0_19 = arith.constant 0 : index
    %c0_20 = arith.constant 0 : index
    %82 = vector.load %arg4[%c0_19, %c0_20] : memref<32x32xbf16, #tpu.memory_space<vmem>>, vector<32x32xbf16>
    %cst_21 = arith.constant dense<0.000000e+00> : vector<64x32xf32>
    %83 = tpu.matmul %81, %82, %cst_21 {dimension_numbers = #tpu.dot_dimension_numbers<[1], [0], [0], [1], [0, 0, 1, 1], [], []>} : vector<64x32xbf16>, vector<32x32xbf16>, vector<64x32xf32> -> vector<64x32xf32>
    %c0_22 = arith.constant 0 : index
    %c0_23 = arith.constant 0 : index
    %84 = vector.load %arg5[%c0_22, %c0_23] : memref<1x32xf32, #tpu.memory_space<vmem>>, vector<1x32xf32>
    %85 = vector.broadcast %84 : vector<1x32xf32> to vector<64x32xf32>
    %86 = arith.addf %83, %85 : vector<64x32xf32>
    %87 = arith.addf %86, %2 : vector<64x32xf32>
    %c0_24 = arith.constant 0 : index
    %c0_25 = arith.constant 0 : index
    %88 = vector.load %arg8[%c0_24, %c0_25] : memref<1x32xf32, #tpu.memory_space<vmem>>, vector<1x32xf32>
    %c0_26 = arith.constant 0 : index
    %c0_27 = arith.constant 0 : index
    %89 = vector.load %arg9[%c0_26, %c0_27] : memref<1x32xf32, #tpu.memory_space<vmem>>, vector<1x32xf32>
    %cst_28 = arith.constant dense<0.000000e+00> : vector<64xf32>
    %90 = vector.multi_reduction <add>, %87, %cst_28 [1] : vector<64x32xf32> to vector<64xf32>
    %91 = vector.shape_cast %90 : vector<64xf32> to vector<64x1xf32>
    %cst_29 = arith.constant 3.200000e+01 : f32
    %92 = vector.broadcast %cst_29 : f32 to vector<64x1xf32>
    %93 = arith.divf %91, %92 : vector<64x1xf32>
    %94 = vector.broadcast %93 : vector<64x1xf32> to vector<64x32xf32>
    %95 = arith.subf %87, %94 : vector<64x32xf32>
    %96 = arith.mulf %95, %95 : vector<64x32xf32>
    %cst_30 = arith.constant dense<0.000000e+00> : vector<64xf32>
    %97 = vector.multi_reduction <add>, %96, %cst_30 [1] : vector<64x32xf32> to vector<64xf32>
    %98 = vector.shape_cast %97 : vector<64xf32> to vector<64x1xf32>
    %cst_31 = arith.constant 3.200000e+01 : f32
    %99 = vector.broadcast %cst_31 : f32 to vector<64x1xf32>
    %100 = arith.divf %98, %99 : vector<64x1xf32>
    %101 = vector.broadcast %93 : vector<64x1xf32> to vector<64x32xf32>
    %102 = arith.subf %87, %101 : vector<64x32xf32>
    %cst_32 = arith.constant 9.99999974E-6 : f32
    %103 = vector.broadcast %cst_32 : f32 to vector<64x1xf32>
    %104 = arith.addf %100, %103 : vector<64x1xf32>
    %105 = math.rsqrt %104 : vector<64x1xf32>
    %106 = vector.broadcast %105 : vector<64x1xf32> to vector<64x32xf32>
    %107 = arith.mulf %102, %106 : vector<64x32xf32>
    %108 = vector.broadcast %88 : vector<1x32xf32> to vector<64x32xf32>
    %109 = arith.mulf %107, %108 : vector<64x32xf32>
    %110 = vector.broadcast %89 : vector<1x32xf32> to vector<64x32xf32>
    %111 = arith.addf %109, %110 : vector<64x32xf32>
    %112 = arith.truncf %111 : vector<64x32xf32> to vector<64x32xbf16>
    %c0_33 = arith.constant 0 : index
    %c0_34 = arith.constant 0 : index
    %113 = vector.load %arg10[%c0_33, %c0_34] : memref<32x32xbf16, #tpu.memory_space<vmem>>, vector<32x32xbf16>
    %cst_35 = arith.constant dense<0.000000e+00> : vector<64x32xf32>
    %114 = tpu.matmul %112, %113, %cst_35 {dimension_numbers = #tpu.dot_dimension_numbers<[1], [0], [0], [1], [0, 0, 1, 1], [], []>} : vector<64x32xbf16>, vector<32x32xbf16>, vector<64x32xf32> -> vector<64x32xf32>
    %c0_36 = arith.constant 0 : index
    %c0_37 = arith.constant 0 : index
    %115 = vector.load %arg11[%c0_36, %c0_37] : memref<1x32xf32, #tpu.memory_space<vmem>>, vector<1x32xf32>
    %116 = vector.broadcast %115 : vector<1x32xf32> to vector<64x32xf32>
    %117 = arith.addf %114, %116 : vector<64x32xf32>
    %cst_38 = arith.constant 5.000000e-01 : f32
    %118 = vector.broadcast %cst_38 : f32 to vector<64x32xf32>
    %119 = arith.mulf %118, %117 : vector<64x32xf32>
    %cst_39 = arith.constant 2.000000e+00 : f32
    %120 = math.sqrt %cst_39 : f32
    %cst_40 = arith.constant 1.000000e+00 : f32
    %121 = arith.divf %cst_40, %120 : f32
    %122 = vector.broadcast %121 : f32 to vector<64x32xf32>
    %123 = arith.mulf %117, %122 : vector<64x32xf32>
    %124 = math.erf %123 : vector<64x32xf32>
    %cst_41 = arith.constant 1.000000e+00 : f32
    %125 = vector.broadcast %cst_41 : f32 to vector<64x32xf32>
    %126 = arith.addf %125, %124 : vector<64x32xf32>
    %127 = arith.mulf %119, %126 : vector<64x32xf32>
    %128 = arith.truncf %127 : vector<64x32xf32> to vector<64x32xbf16>
    %c0_42 = arith.constant 0 : index
    %c0_43 = arith.constant 0 : index
    %129 = vector.load %arg12[%c0_42, %c0_43] : memref<32x32xbf16, #tpu.memory_space<vmem>>, vector<32x32xbf16>
    %cst_44 = arith.constant dense<0.000000e+00> : vector<64x32xf32>
    %130 = tpu.matmul %128, %129, %cst_44 {dimension_numbers = #tpu.dot_dimension_numbers<[1], [0], [0], [1], [0, 0, 1, 1], [], []>} : vector<64x32xbf16>, vector<32x32xbf16>, vector<64x32xf32> -> vector<64x32xf32>
    %c0_45 = arith.constant 0 : index
    %c0_46 = arith.constant 0 : index
    %131 = vector.load %arg13[%c0_45, %c0_46] : memref<1x32xf32, #tpu.memory_space<vmem>>, vector<1x32xf32>
    %132 = vector.broadcast %131 : vector<1x32xf32> to vector<64x32xf32>
    %133 = arith.addf %130, %132 : vector<64x32xf32>
    %134 = arith.addf %133, %87 : vector<64x32xf32>
    %135 = tpu.transpose %134, [1, 0] : vector<64x32xf32> -> vector<32x64xf32>
    %136 = vector.shape_cast %135 : vector<32x64xf32> to vector<1x32x64xf32>
    %c0_47 = arith.constant 0 : index
    %c0_48 = arith.constant 0 : index
    %c0_49 = arith.constant 0 : index
    %137 = vector.load %arg14[%c0_47, %c0_48, %c0_49] : memref<1x32x64xf32, #tpu.memory_space<vmem>>, vector<1x32x64xf32>
    tpu.vector_store %arg14[%c0_47, %c0_48, %c0_49], %136 {strides = array<i32>} : memref<1x32x64xf32, #tpu.memory_space<vmem>>, vector<1x32x64xf32>,
    return
  }
  func.func @transform_0(%arg0: i32) -> (i32, i32, i32) {
    %c0_i32 = arith.constant 0 : i32
    %c0_i32_0 = arith.constant 0 : i32
    %c0_i32_1 = arith.constant 0 : i32
    return %arg0, %c0_i32, %c0_i32_0 : i32, i32, i32
  }
  func.func @transform_1(%arg0: i32) -> (i32, i32) {
    %c0_i32 = arith.constant 0 : i32
    %c0_i32_0 = arith.constant 0 : i32
    %c0_i32_1 = arith.constant 0 : i32
    return %c0_i32, %c0_i32_0 : i32, i32
  }
  func.func @transform_2(%arg0: i32) -> (i32, i32) {
    %c0_i32 = arith.constant 0 : i32
    %c0_i32_0 = arith.constant 0 : i32
    %c0_i32_1 = arith.constant 0 : i32
    return %c0_i32, %c0_i32_0 : i32, i32
  }
  func.func @transform_3(%arg0: i32) -> (i32, i32) {
    %c0_i32 = arith.constant 0 : i32
    %c0_i32_0 = arith.constant 0 : i32
    %c0_i32_1 = arith.constant 0 : i32
    return %c0_i32, %c0_i32_0 : i32, i32
  }
  func.func @transform_4(%arg0: i32) -> (i32, i32) {
    %c0_i32 = arith.constant 0 : i32
    %c0_i32_0 = arith.constant 0 : i32
    %c0_i32_1 = arith.constant 0 : i32
    return %c0_i32, %c0_i32_0 : i32, i32
  }
  func.func @transform_5(%arg0: i32) -> (i32, i32) {
    %c0_i32 = arith.constant 0 : i32
    %c0_i32_0 = arith.constant 0 : i32
    %c0_i32_1 = arith.constant 0 : i32
    return %c0_i32, %c0_i32_0 : i32, i32
  }
  func.func @transform_6(%arg0: i32) -> (i32, i32) {
    %c0_i32 = arith.constant 0 : i32
    %c0_i32_0 = arith.constant 0 : i32
    %c0_i32_1 = arith.constant 0 : i32
    return %c0_i32, %c0_i32_0 : i32, i32
  }
  func.func @transform_7(%arg0: i32) -> (i32, i32) {
    %c0_i32 = arith.constant 0 : i32
    %c0_i32_0 = arith.constant 0 : i32
    %c0_i32_1 = arith.constant 0 : i32
    return %c0_i32, %c0_i32_0 : i32, i32
  }
  func.func @transform_8(%arg0: i32) -> (i32, i32) {
    %c0_i32 = arith.constant 0 : i32
    %c0_i32_0 = arith.constant 0 : i32
    %c0_i32_1 = arith.constant 0 : i32
    return %c0_i32, %c0_i32_0 : i32, i32
  }
  func.func @transform_9(%arg0: i32) -> (i32, i32) {
    %c0_i32 = arith.constant 0 : i32
    %c0_i32_0 = arith.constant 0 : i32
    %c0_i32_1 = arith.constant 0 : i32
    return %c0_i32, %c0_i32_0 : i32, i32
  }
  func.func @transform_10(%arg0: i32) -> (i32, i32) {
    %c0_i32 = arith.constant 0 : i32
    %c0_i32_0 = arith.constant 0 : i32
    %c0_i32_1 = arith.constant 0 : i32
    return %c0_i32, %c0_i32_0 : i32, i32
  }
  func.func @transform_11(%arg0: i32) -> (i32, i32) {
    %c0_i32 = arith.constant 0 : i32
    %c0_i32_0 = arith.constant 0 : i32
    %c0_i32_1 = arith.constant 0 : i32
    return %c0_i32, %c0_i32_0 : i32, i32
  }
  func.func @transform_12(%arg0: i32) -> (i32, i32) {
    %c0_i32 = arith.constant 0 : i32
    %c0_i32_0 = arith.constant 0 : i32
    %c0_i32_1 = arith.constant 0 : i32
    return %c0_i32, %c0_i32_0 : i32, i32
  }
  func.func @transform_13(%arg0: i32) -> (i32, i32, i32) {
    %c0_i32 = arith.constant 0 : i32
    %c0_i32_0 = arith.constant 0 : i32
    %c0_i32_1 = arith.constant 0 : i32
    return %arg0, %c0_i32, %c0_i32_0 : i32, i32, i32
  }
}

</mosaic_0001>

<llo_original>
// kernel: tpu_custom_call.1
$region0: #{tpu_custom_call.1}
  #allocation0 [shape = 'u32[]', space=smem, size = 0x4, offset = 0x4, fixed_abs, tag = 'smem constant byte address 0x4 - core index']
  #allocation1 [shape = 'u32[72,128]{1,0:T(1,128)}', space=vmem, size = 0x9000, scoped, tag = 'internal scratch']
  %s0 = inlined_call_operand.hbm [shape: f32[2,32,64], index: 0, kind: input, shape index: {}]
  %s1 = inlined_call_operand.hbm [shape: bf16[32,128], index: 1, kind: input, shape index: {}]
  %s2 = inlined_call_operand.vmem [shape: f32[1,128], index: 2, kind: input, shape index: {}]
  %s3 = inlined_call_operand.hbm [shape: bf16[32,32], index: 3, kind: input, shape index: {}]
  %s4 = inlined_call_operand.vmem [shape: f32[1,32], index: 4, kind: input, shape index: {}]
  %s5 = inlined_call_operand.vmem [shape: f32[1,32], index: 5, kind: input, shape index: {}]
  %s6 = inlined_call_operand.vmem [shape: f32[1,32], index: 6, kind: input, shape index: {}]
  %s7 = inlined_call_operand.vmem [shape: f32[1,32], index: 7, kind: input, shape index: {}]
  %s8 = inlined_call_operand.vmem [shape: f32[1,32], index: 8, kind: input, shape index: {}]
  %s9 = inlined_call_operand.hbm [shape: bf16[32,32], index: 9, kind: input, shape index: {}]
  %s10 = inlined_call_operand.vmem [shape: f32[1,32], index: 10, kind: input, shape index: {}]
  %s11 = inlined_call_operand.hbm [shape: bf16[32,32], index: 11, kind: input, shape index: {}]
  %s12 = inlined_call_operand.vmem [shape: f32[1,32], index: 12, kind: input, shape index: {}]
  %s13 = inlined_call_operand.hbm [shape: f32[2,32,64], index: 13, kind: output, shape index: {}]
  %s14 = sld [smem:[#allocation0]]
  $region105: #{tpu_custom_call.1} parent=0
    _
  %s16 = ssub.s32 1, %s14
  %s17 = scalar_select 0, %s16, %s14
  $region1: #{tpu_custom_call.1} parent=0
    #allocation2 [shape = 'u8[32768]{0}', space=vmem, size = 0x8000, scoped, tag = 'input window, operand 0']
    #allocation3 [shape = 's32[2]{0}', space=sflag, size = 0x8, scoped, tag = 'scoped memory for tpu_custom_call.1']
    #allocation4 [shape = 's32[2]{0}', space=sflag, size = 0x8, scoped, tag = 'scoped memory for tpu_custom_call.1']
    #allocation5 [shape = 'u8[8192]{0}', space=vmem, size = 0x2000, scoped, tag = 'input window, operand 1, single buffered']
    #allocation6 [shape = 's32[1]{0}', space=sflag, size = 0x4, scoped, tag = 'scoped memory for tpu_custom_call.1']
    #allocation7 [shape = 'u8[8192]{0}', space=vmem, size = 0x2000, scoped, tag = 'input window, operand 3, single buffered']
    #allocation8 [shape = 'u8[8192]{0}', space=vmem, size = 0x2000, scoped, tag = 'input window, operand 9, single buffered']
    #allocation9 [shape = 's32[1]{0}', space=sflag, size = 0x4, scoped, tag = 'scoped memory for tpu_custom_call.1']
    #allocation10 [shape = 'u8[8192]{0}', space=vmem, size = 0x2000, scoped, tag = 'input window, operand 11, single buffered']
    #allocation11 [shape = 'u8[32768]{0}', space=vmem, size = 0x8000, scoped, tag = 'output window, operand 0']
    %18 = vsyncpa [#allocation3], 0
    %s19 = scalar_lea.sflag [#allocation3], 1
    %20 = vsyncpa %s19, 0
    %21 = vsyncpa [#allocation6], 0
    %22 = vsyncpa [#allocation9], 0
    %23 = vsyncpa [#allocation4], 0
    %s24 = scalar_lea.sflag [#allocation4], 1
    %25 = vsyncpa %s24, 0
    loop: start=0, step=1, limit=4
    $region2: #{tpu_custom_call.1} parent=1 // loop_pre_header
      _
    $region3: #{tpu_custom_call.1} parent=1 // loop_header
      %s27 = sphi 0, %s31
      %p28 = scmp.ge.s32.totalorder %s27, 4
      %s37 = sphi 0, %s39
      %s40 = sphi 0, %s37
      %s41 = sphi 0, %s40
      %s57 = sphi 0, %s41
      %s61 = sphi 0, %s61
      %s63 = sphi 0, %s61
      %s64 = sphi 0, %s63
      %s78 = sphi 0, %s64
      %s82 = sphi 0, %s82
      %s84 = sphi 0, %s82
      %s85 = sphi 0, %s84
      %s99 = sphi 0, %s85
      %s103 = sphi 0, %s103
      %s105 = sphi 0, %s103
      %s106 = sphi 0, %s105
      %s120 = sphi 0, %s106
      %s124 = sphi 0, %s124
      %s126 = sphi 0, %s124
      %s127 = sphi 0, %s126
      %s141 = sphi 0, %s127
      %s145 = sphi 0, %s145
      %s147 = sphi 0, %s145
      %s148 = sphi 0, %s147
      %s162 = sphi 0, %s148
      %s166 = sphi 0, %s166
      %s168 = sphi 0, %s166
      %s169 = sphi 0, %s168
      %s183 = sphi 0, %s169
      %s187 = sphi 0, %s187
      %s189 = sphi 0, %s187
      %s190 = sphi 0, %s189
      %s204 = sphi 0, %s190
      %s208 = sphi 0, %s208
      %s210 = sphi 0, %s208
      %s211 = sphi 0, %s210
      %s225 = sphi 0, %s211
      %s229 = sphi 0, %s229
      %s231 = sphi 0, %s229
      %s232 = sphi 0, %s231
      %s246 = sphi 0, %s232
      %s250 = sphi 0, %s250
      %s252 = sphi 0, %s250
      %s253 = sphi 0, %s252
      %s267 = sphi 0, %s253
      %s271 = sphi 0, %s271
      %s273 = sphi 0, %s271
      %s274 = sphi 0, %s273
      %s288 = sphi 0, %s274
      %s292 = sphi 0, %s292
      %s294 = sphi 0, %s292
      %s295 = sphi 0, %s294
      %s309 = sphi 0, %s295
      %s315 = sphi 0, %s317
      %s318 = sphi 0, %s315
      %s319 = sphi 0, %s318
      %s335 = sphi 0, %s319
    $region4: #{tpu_custom_call.1} parent=1 // loop_header_branch
      %30 = sbr.rel (%p28) target = $region8
    $region5: #{tpu_custom_call.1} parent=1 // loop_body
      %s32 = ssub.s32 %s27, 1
      %s33 = ssub.s32 %s27, 2
      %s34 = sadd.s32 %s27, 1
      %s35 = ssub.s32 %s27, %s34
      %p36 = scmp.eq.s32.totalorder %s35, 0
      %s38 = sadd.s32 %s37, 1
      %s39 = scalar_select %p36, %s37, %s38
      %p42 = pneg %p36
      %p43 = scmp.eq.s32.totalorder %s27, 1
      %p44 = por %p42, %p43
      %p45 = scmp.ne.s32.totalorder %s37, %s40
      %p46 = scmp.eq.s32.totalorder %s27, 0
      %p47 = por %p45, %p46
      %p48 = scmp.ne.s32.totalorder %s37, %s40
      %p49 = scmp.eq.s32.totalorder %s32, 1
      %p50 = por %p48, %p49
      %p51 = scmp.ne.s32.totalorder %s40, %s41
      %p52 = scmp.eq.s32.totalorder %s32, 0
      %p53 = por %p51, %p52
      %p54 = scmp.ne.s32.totalorder %s40, %s41
      %p55 = scmp.eq.s32.totalorder %s33, 1
      %p56 = por %p54, %p55
      %p58 = scmp.ne.s32.totalorder %s41, %s57
      %p59 = scmp.eq.s32.totalorder %s33, 0
      %p60 = por %p58, %p59
      %s62 = sadd.s32 %s61, 1
      %p65 = scmp.eq.s32.totalorder %s27, 1
      %p66 = scmp.ne.s32.totalorder %s61, %s63
      %p67 = scmp.eq.s32.totalorder %s27, 0
      %p68 = por %p66, %p67
      %p69 = scmp.ne.s32.totalorder %s61, %s63
      %p70 = scmp.eq.s32.totalorder %s32, 1
      %p71 = por %p69, %p70
      %p72 = scmp.ne.s32.totalorder %s63, %s64
      %p73 = scmp.eq.s32.totalorder %s32, 0
      %p74 = por %p72, %p73
      %p75 = scmp.ne.s32.totalorder %s63, %s64
      %p76 = scmp.eq.s32.totalorder %s33, 1
      %p77 = por %p75, %p76
      %p79 = scmp.ne.s32.totalorder %s64, %s78
      %p80 = scmp.eq.s32.totalorder %s33, 0
      %p81 = por %p79, %p80
      %s83 = sadd.s32 %s82, 1
      %p86 = scmp.eq.s32.totalorder %s27, 1
      %p87 = scmp.ne.s32.totalorder %s82, %s84
      %p88 = scmp.eq.s32.totalorder %s27, 0
      %p89 = por %p87, %p88
      %p90 = scmp.ne.s32.totalorder %s82, %s84
      %p91 = scmp.eq.s32.totalorder %s32, 1
      %p92 = por %p90, %p91
      %p93 = scmp.ne.s32.totalorder %s84, %s85
      %p94 = scmp.eq.s32.totalorder %s32, 0
      %p95 = por %p93, %p94
      %p96 = scmp.ne.s32.totalorder %s84, %s85
      %p97 = scmp.eq.s32.totalorder %s33, 1
      %p98 = por %p96, %p97
      %p100 = scmp.ne.s32.totalorder %s85, %s99
      %p101 = scmp.eq.s32.totalorder %s33, 0
      %p102 = por %p100, %p101
      %s104 = sadd.s32 %s103, 1
      %p107 = scmp.eq.s32.totalorder %s27, 1
      %p108 = scmp.ne.s32.totalorder %s103, %s105
      %p109 = scmp.eq.s32.totalorder %s27, 0
      %p110 = por %p108, %p109
      %p111 = scmp.ne.s32.totalorder %s103, %s105
      %p112 = scmp.eq.s32.totalorder %s32, 1
      %p113 = por %p111, %p112
      %p114 = scmp.ne.s32.totalorder %s105, %s106
      %p115 = scmp.eq.s32.totalorder %s32, 0
      %p116 = por %p114, %p115
      %p117 = scmp.ne.s32.totalorder %s105, %s106
      %p118 = scmp.eq.s32.totalorder %s33, 1
      %p119 = por %p117, %p118
      %p121 = scmp.ne.s32.totalorder %s106, %s120
      %p122 = scmp.eq.s32.totalorder %s33, 0
      %p123 = por %p121, %p122
      %s125 = sadd.s32 %s124, 1
      %p128 = scmp.eq.s32.totalorder %s27, 1
      %p129 = scmp.ne.s32.totalorder %s124, %s126
      %p130 = scmp.eq.s32.totalorder %s27, 0
      %p131 = por %p129, %p130
      %p132 = scmp.ne.s32.totalorder %s124, %s126
      %p133 = scmp.eq.s32.totalorder %s32, 1
      %p134 = por %p132, %p133
      %p135 = scmp.ne.s32.totalorder %s126, %s127
      %p136 = scmp.eq.s32.totalorder %s32, 0
      %p137 = por %p135, %p136
      %p138 = scmp.ne.s32.totalorder %s126, %s127
      %p139 = scmp.eq.s32.totalorder %s33, 1
      %p140 = por %p138, %p139
      %p142 = scmp.ne.s32.totalorder %s127, %s141
      %p143 = scmp.eq.s32.totalorder %s33, 0
      %p144 = por %p142, %p143
      %s146 = sadd.s32 %s145, 1
      %p149 = scmp.eq.s32.totalorder %s27, 1
      %p150 = scmp.ne.s32.totalorder %s145, %s147
      %p151 = scmp.eq.s32.totalorder %s27, 0
      %p152 = por %p150, %p151
      %p153 = scmp.ne.s32.totalorder %s145, %s147
      %p154 = scmp.eq.s32.totalorder %s32, 1
      %p155 = por %p153, %p154
      %p156 = scmp.ne.s32.totalorder %s147, %s148
      %p157 = scmp.eq.s32.totalorder %s32, 0
      %p158 = por %p156, %p157
      %p159 = scmp.ne.s32.totalorder %s147, %s148
      %p160 = scmp.eq.s32.totalorder %s33, 1
      %p161 = por %p159, %p160
      %p163 = scmp.ne.s32.totalorder %s148, %s162
      %p164 = scmp.eq.s32.totalorder %s33, 0
      %p165 = por %p163, %p164
      %s167 = sadd.s32 %s166, 1
      %p170 = scmp.eq.s32.totalorder %s27, 1
      %p171 = scmp.ne.s32.totalorder %s166, %s168
      %p172 = scmp.eq.s32.totalorder %s27, 0
      %p173 = por %p171, %p172
      %p174 = scmp.ne.s32.totalorder %s166, %s168
      %p175 = scmp.eq.s32.totalorder %s32, 1
      %p176 = por %p174, %p175
      %p177 = scmp.ne.s32.totalorder %s168, %s169
      %p178 = scmp.eq.s32.totalorder %s32, 0
      %p179 = por %p177, %p178
      %p180 = scmp.ne.s32.totalorder %s168, %s169
      %p181 = scmp.eq.s32.totalorder %s33, 1
      %p182 = por %p180, %p181
      %p184 = scmp.ne.s32.totalorder %s169, %s183
      %p185 = scmp.eq.s32.totalorder %s33, 0
      %p186 = por %p184, %p185
      %s188 = sadd.s32 %s187, 1
      %p191 = scmp.eq.s32.totalorder %s27, 1
      %p192 = scmp.ne.s32.totalorder %s187, %s189
      %p193 = scmp.eq.s32.totalorder %s27, 0
      %p194 = por %p192, %p193
      %p195 = scmp.ne.s32.totalorder %s187, %s189
      %p196 = scmp.eq.s32.totalorder %s32, 1
      %p197 = por %p195, %p196
      %p198 = scmp.ne.s32.totalorder %s189, %s190
      %p199 = scmp.eq.s32.totalorder %s32, 0
      %p200 = por %p198, %p199
      %p201 = scmp.ne.s32.totalorder %s189, %s190
      %p202 = scmp.eq.s32.totalorder %s33, 1
      %p203 = por %p201, %p202
      %p205 = scmp.ne.s32.totalorder %s190, %s204
      %p206 = scmp.eq.s32.totalorder %s33, 0
      %p207 = por %p205, %p206
      %s209 = sadd.s32 %s208, 1
      %p212 = scmp.eq.s32.totalorder %s27, 1
      %p213 = scmp.ne.s32.totalorder %s208, %s210
      %p214 = scmp.eq.s32.totalorder %s27, 0
      %p215 = por %p213, %p214
      %p216 = scmp.ne.s32.totalorder %s208, %s210
      %p217 = scmp.eq.s32.totalorder %s32, 1
      %p218 = por %p216, %p217
      %p219 = scmp.ne.s32.totalorder %s210, %s211
      %p220 = scmp.eq.s32.totalorder %s32, 0
      %p221 = por %p219, %p220
      %p222 = scmp.ne.s32.totalorder %s210, %s211
      %p223 = scmp.eq.s32.totalorder %s33, 1
      %p224 = por %p222, %p223
      %p226 = scmp.ne.s32.totalorder %s211, %s225
      %p227 = scmp.eq.s32.totalorder %s33, 0
      %p228 = por %p226, %p227
      %s230 = sadd.s32 %s229, 1
      %p233 = scmp.eq.s32.totalorder %s27, 1
      %p234 = scmp.ne.s32.totalorder %s229, %s231
      %p235 = scmp.eq.s32.totalorder %s27, 0
      %p236 = por %p234, %p235
      %p237 = scmp.ne.s32.totalorder %s229, %s231
      %p238 = scmp.eq.s32.totalorder %s32, 1
      %p239 = por %p237, %p238
      %p240 = scmp.ne.s32.totalorder %s231, %s232
      %p241 = scmp.eq.s32.totalorder %s32, 0
      %p242 = por %p240, %p241
      %p243 = scmp.ne.s32.totalorder %s231, %s232
      %p244 = scmp.eq.s32.totalorder %s33, 1
      %p245 = por %p243, %p244
      %p247 = scmp.ne.s32.totalorder %s232, %s246
      %p248 = scmp.eq.s32.totalorder %s33, 0
      %p249 = por %p247, %p248
      %s251 = sadd.s32 %s250, 1
      %p254 = scmp.eq.s32.totalorder %s27, 1
      %p255 = scmp.ne.s32.totalorder %s250, %s252
      %p256 = scmp.eq.s32.totalorder %s27, 0
      %p257 = por %p255, %p256
      %p258 = scmp.ne.s32.totalorder %s250, %s252
      %p259 = scmp.eq.s32.totalorder %s32, 1
      %p260 = por %p258, %p259
      %p261 = scmp.ne.s32.totalorder %s252, %s253
      %p262 = scmp.eq.s32.totalorder %s32, 0
      %p263 = por %p261, %p262
      %p264 = scmp.ne.s32.totalorder %s252, %s253
      %p265 = scmp.eq.s32.totalorder %s33, 1
      %p266 = por %p264, %p265
      %p268 = scmp.ne.s32.totalorder %s253, %s267
      %p269 = scmp.eq.s32.totalorder %s33, 0
      %p270 = por %p268, %p269
      %s272 = sadd.s32 %s271, 1
      %p275 = scmp.eq.s32.totalorder %s27, 1
      %p276 = scmp.ne.s32.totalorder %s271, %s273
      %p277 = scmp.eq.s32.totalorder %s27, 0
      %p278 = por %p276, %p277
      %p279 = scmp.ne.s32.totalorder %s271, %s273
      %p280 = scmp.eq.s32.totalorder %s32, 1
      %p281 = por %p279, %p280
      %p282 = scmp.ne.s32.totalorder %s273, %s274
      %p283 = scmp.eq.s32.totalorder %s32, 0
      %p284 = por %p282, %p283
      %p285 = scmp.ne.s32.totalorder %s273, %s274
      %p286 = scmp.eq.s32.totalorder %s33, 1
      %p287 = por %p285, %p286
      %p289 = scmp.ne.s32.totalorder %s274, %s288
      %p290 = scmp.eq.s32.totalorder %s33, 0
      %p291 = por %p289, %p290
      %s293 = sadd.s32 %s292, 1
      %p296 = scmp.eq.s32.totalorder %s27, 1
      %p297 = scmp.ne.s32.totalorder %s292, %s294
      %p298 = scmp.eq.s32.totalorder %s27, 0
      %p299 = por %p297, %p298
      %p300 = scmp.ne.s32.totalorder %s292, %s294
      %p301 = scmp.eq.s32.totalorder %s32, 1
      %p302 = por %p300, %p301
      %p303 = scmp.ne.s32.totalorder %s294, %s295
      %p304 = scmp.eq.s32.totalorder %s32, 0
      %p305 = por %p303, %p304
      %p306 = scmp.ne.s32.totalorder %s294, %s295
      %p307 = scmp.eq.s32.totalorder %s33, 1
      %p308 = por %p306, %p307
      %p310 = scmp.ne.s32.totalorder %s295, %s309
      %p311 = scmp.eq.s32.totalorder %s33, 0
      %p312 = por %p310, %p311
      %s313 = ssub.s32 %s27, %s34
      %p314 = scmp.eq.s32.totalorder %s313, 0
      %s316 = sadd.s32 %s315, 1
      %s317 = scalar_select %p314, %s315, %s316
      %p320 = pneg %p314
      %p321 = scmp.eq.s32.totalorder %s27, 1
      %p322 = por %p320, %p321
      %p323 = scmp.ne.s32.totalorder %s315, %s318
      %p324 = scmp.eq.s32.totalorder %s27, 0
      %p325 = por %p323, %p324
      %p326 = scmp.ne.s32.totalorder %s315, %s318
      %p327 = scmp.eq.s32.totalorder %s32, 1
      %p328 = por %p326, %p327
      %p329 = scmp.ne.s32.totalorder %s318, %s319
      %p330 = scmp.eq.s32.totalorder %s32, 0
      %p331 = por %p329, %p330
      %p332 = scmp.ne.s32.totalorder %s318, %s319
      %p333 = scmp.eq.s32.totalorder %s33, 1
      %p334 = por %p332, %p333
      %p336 = scmp.ne.s32.totalorder %s319, %s335
      %p337 = scmp.eq.s32.totalorder %s33, 0
      %p338 = por %p336, %p337
      %p339 = scmp.le.s32.totalorder 1, %s27
      %p340 = scmp.lt.s32.totalorder %s27, 3
      %p341 = pnand %p339, %p340
      %p342 = pneg %p341
      // Predicated region
      $region9: #{tpu_custom_call.1} parent=5 // pred_check
        _
      $region10: #{tpu_custom_call.1} parent=5 // pred_check_branch
        %344 = sbr.rel (%p341) target = $region12
      $region11: #{tpu_custom_call.1} parent=5 // pred_region
        %s345 = ssub.s32 %s27, 1
        // Predicated region
        $region13: #{tpu_custom_call.1} parent=11 // pred_check
          %p346 = pneg %p74
        $region14: #{tpu_custom_call.1} parent=11 // pred_check_branch
          %348 = sbr.rel (%p346) target = $region16
        $region15: #{tpu_custom_call.1} parent=11 // pred_region
          %350 = vsyncadd [#allocation6], 0
          %s351 = sshll.u32 %s1, 4
          %s352 = int_to_ptr.hbm [resolvable:$true] %s351
          %s353 = sshll.u32 [#allocation5], 4
          %s354 = int_to_ptr.vmem [resolvable:$true] %s353
          %359 = dma.hbm_to_vmem [thread:$0]  %s352, 256, %s354, [#allocation6], 64, 64, 4
        $region16: #{tpu_custom_call.1} parent=11 // pred_fallthru
          _
        // Predicated region
        $region17: #{tpu_custom_call.1} parent=11 // pred_check
          %p360 = pneg %p95
        $region18: #{tpu_custom_call.1} parent=11 // pred_check_branch
          %362 = sbr.rel (%p360) target = $region20
        $region19: #{tpu_custom_call.1} parent=11 // pred_region
          _
        $region20: #{tpu_custom_call.1} parent=11 // pred_fallthru
          _
        // Predicated region
        $region21: #{tpu_custom_call.1} parent=11 // pred_check
          %p363 = pneg %p116
        $region22: #{tpu_custom_call.1} parent=11 // pred_check_branch
          %365 = sbr.rel (%p363) target = $region24
        $region23: #{tpu_custom_call.1} parent=11 // pred_region
          %367 = vsyncadd [#allocation6], 0
          %s368 = sshll.u32 %s3, 4
          %s369 = int_to_ptr.hbm [resolvable:$true] %s368
          %s370 = sshll.u32 [#allocation7], 4
          %s371 = int_to_ptr.vmem [resolvable:$true] %s370
          %376 = dma.hbm_to_vmem [thread:$0]  %s369, 256, %s371, [#allocation6], 64, 64, 4
        $region24: #{tpu_custom_call.1} parent=11 // pred_fallthru
          _
        // Predicated region
        $region25: #{tpu_custom_call.1} parent=11 // pred_check
          %p377 = pneg %p137
        $region26: #{tpu_custom_call.1} parent=11 // pred_check_branch
          %379 = sbr.rel (%p377) target = $region28
        $region27: #{tpu_custom_call.1} parent=11 // pred_region
          _
        $region28: #{tpu_custom_call.1} parent=11 // pred_fallthru
          _
        // Predicated region
        $region29: #{tpu_custom_call.1} parent=11 // pred_check
          %p380 = pneg %p158
        $region30: #{tpu_custom_call.1} parent=11 // pred_check_branch
          %382 = sbr.rel (%p380) target = $region32
        $region31: #{tpu_custom_call.1} parent=11 // pred_region
          _
        $region32: #{tpu_custom_call.1} parent=11 // pred_fallthru
          _
        // Predicated region
        $region33: #{tpu_custom_call.1} parent=11 // pred_check
          %p383 = pneg %p179
        $region34: #{tpu_custom_call.1} parent=11 // pred_check_branch
          %385 = sbr.rel (%p383) target = $region36
        $region35: #{tpu_custom_call.1} parent=11 // pred_region
          _
        $region36: #{tpu_custom_call.1} parent=11 // pred_fallthru
          _
        // Predicated region
        $region37: #{tpu_custom_call.1} parent=11 // pred_check
          %p386 = pneg %p200
        $region38: #{tpu_custom_call.1} parent=11 // pred_check_branch
          %388 = sbr.rel (%p386) target = $region40
        $region39: #{tpu_custom_call.1} parent=11 // pred_region
          _
        $region40: #{tpu_custom_call.1} parent=11 // pred_fallthru
          _
        // Predicated region
        $region41: #{tpu_custom_call.1} parent=11 // pred_check
          %p389 = pneg %p221
        $region42: #{tpu_custom_call.1} parent=11 // pred_check_branch
          %391 = sbr.rel (%p389) target = $region44
        $region43: #{tpu_custom_call.1} parent=11 // pred_region
          _
        $region44: #{tpu_custom_call.1} parent=11 // pred_fallthru
          _
        // Predicated region
        $region45: #{tpu_custom_call.1} parent=11 // pred_check
          %p392 = pneg %p242
        $region46: #{tpu_custom_call.1} parent=11 // pred_check_branch
          %394 = sbr.rel (%p392) target = $region48
        $region47: #{tpu_custom_call.1} parent=11 // pred_region
          %396 = vsyncadd [#allocation9], 0
          %s397 = sshll.u32 %s9, 4
          %s398 = int_to_ptr.hbm [resolvable:$true] %s397
          %s399 = sshll.u32 [#allocation8], 4
          %s400 = int_to_ptr.vmem [resolvable:$true] %s399
          %405 = dma.hbm_to_vmem [thread:$0]  %s398, 256, %s400, [#allocation9], 64, 64, 4
        $region48: #{tpu_custom_call.1} parent=11 // pred_fallthru
          _
        // Predicated region
        $region49: #{tpu_custom_call.1} parent=11 // pred_check
          %p406 = pneg %p263
        $region50: #{tpu_custom_call.1} parent=11 // pred_check_branch
          %408 = sbr.rel (%p406) target = $region52
        $region51: #{tpu_custom_call.1} parent=11 // pred_region
          _
        $region52: #{tpu_custom_call.1} parent=11 // pred_fallthru
          _
        // Predicated region
        $region53: #{tpu_custom_call.1} parent=11 // pred_check
          %p409 = pneg %p284
        $region54: #{tpu_custom_call.1} parent=11 // pred_check_branch
          %411 = sbr.rel (%p409) target = $region56
        $region55: #{tpu_custom_call.1} parent=11 // pred_region
          %413 = vsyncadd [#allocation9], 0
          %s414 = sshll.u32 %s11, 4
          %s415 = int_to_ptr.hbm [resolvable:$true] %s414
          %s416 = sshll.u32 [#allocation10], 4
          %s417 = int_to_ptr.vmem [resolvable:$true] %s416
          %422 = dma.hbm_to_vmem [thread:$0]  %s415, 256, %s417, [#allocation9], 64, 64, 4
        $region56: #{tpu_custom_call.1} parent=11 // pred_fallthru
          _
        // Predicated region
        $region57: #{tpu_custom_call.1} parent=11 // pred_check
          %p423 = pneg %p305
        $region58: #{tpu_custom_call.1} parent=11 // pred_check_branch
          %425 = sbr.rel (%p423) target = $region60
        $region59: #{tpu_custom_call.1} parent=11 // pred_region
          _
        $region60: #{tpu_custom_call.1} parent=11 // pred_fallthru
          _
      $region12: #{tpu_custom_call.1} parent=5 // pred_fallthru
        _
      %p426 = scmp.lt.s32.totalorder %s27, 2
      // Predicated region
      $region61: #{tpu_custom_call.1} parent=5 // pred_check
        %p427 = pneg %p426
      $region62: #{tpu_custom_call.1} parent=5 // pred_check_branch
        %429 = sbr.rel (%p427) target = $region64
      $region63: #{tpu_custom_call.1} parent=5 // pred_region
        // Predicated region
        $region65: #{tpu_custom_call.1} parent=63 // pred_check
          %p430 = pneg %p47
        $region66: #{tpu_custom_call.1} parent=63 // pred_check_branch
          %432 = sbr.rel (%p430) target = $region68
        $region67: #{tpu_custom_call.1} parent=63 // pred_region
          %s433 = sand.u32 %s37, 1
          %s434 = scalar_lea.sflag [#allocation3], %s433
          %s435 = sand.u32 %s37, 1
          %s436 = smul.addr %s435, 32
          %s437 = scalar_lea.vmem [#allocation2], %s436
          %439 = vsyncadd %s434, 0
          %s440 = smul.addr %s27, 4
          %s441 = smul.addr %s440, 8
          %s442 = scalar_lea.hbm %s0, %s441
          %s443 = sshll.u32 %s442, 4
          %s444 = int_to_ptr.hbm [resolvable:$true] %s443
          %s445 = sshll.u32 %s437, 4
          %s446 = int_to_ptr.vmem [resolvable:$true] %s445
          %451 = dma.hbm_to_vmem [thread:$0]  %s444, 512, %s446, %s434, 128, 128, 8
        $region68: #{tpu_custom_call.1} parent=63 // pred_fallthru
          _
      $region64: #{tpu_custom_call.1} parent=5 // pred_fallthru
        _
      %p452 = scmp.le.s32.totalorder 1, %s27
      %p453 = scmp.lt.s32.totalorder %s27, 3
      %p454 = pnand %p452, %p453
      %p455 = pneg %p454
      // Predicated region
      $region69: #{tpu_custom_call.1} parent=5 // pred_check
        _
      $region70: #{tpu_custom_call.1} parent=5 // pred_check_branch
        %457 = sbr.rel (%p454) target = $region72
      $region71: #{tpu_custom_call.1} parent=5 // pred_region
        %s458 = ssub.s32 %s27, 1
        %s459 = sand.u32 %s40, 1
        %s460 = scalar_lea.sflag [#allocation3], %s459
        %s461 = sand.u32 %s40, 1
        %s462 = smul.addr %s461, 32
        %s463 = scalar_lea.vmem [#allocation2], %s462
        // Predicated region
        $region73: #{tpu_custom_call.1} parent=71 // pred_check
          %p464 = pneg %p53
        $region74: #{tpu_custom_call.1} parent=71 // pred_check_branch
          %466 = sbr.rel (%p464) target = $region76
        $region75: #{tpu_custom_call.1} parent=71 // pred_region
          %468 = dma.done %s460, 512
        $region76: #{tpu_custom_call.1} parent=71 // pred_fallthru
          _
        // Predicated region
        $region77: #{tpu_custom_call.1} parent=71 // pred_check
          %p469 = pneg %p74
        $region78: #{tpu_custom_call.1} parent=71 // pred_check_branch
          %471 = sbr.rel (%p469) target = $region80
        $region79: #{tpu_custom_call.1} parent=71 // pred_region
          %473 = dma.done [#allocation6], 256
        $region80: #{tpu_custom_call.1} parent=71 // pred_fallthru
          _
        // Predicated region
        $region81: #{tpu_custom_call.1} parent=71 // pred_check
          %p474 = pneg %p116
        $region82: #{tpu_custom_call.1} parent=71 // pred_check_branch
          %476 = sbr.rel (%p474) target = $region84
        $region83: #{tpu_custom_call.1} parent=71 // pred_region
          %478 = dma.done [#allocation6], 256
        $region84: #{tpu_custom_call.1} parent=71 // pred_fallthru
          _
        // Predicated region
        $region85: #{tpu_custom_call.1} parent=71 // pred_check
          %p479 = pneg %p242
        $region86: #{tpu_custom_call.1} parent=71 // pred_check_branch
          %481 = sbr.rel (%p479) target = $region88
        $region87: #{tpu_custom_call.1} parent=71 // pred_region
          %483 = dma.done [#allocation9], 256
        $region88: #{tpu_custom_call.1} parent=71 // pred_fallthru
          _
        // Predicated region
        $region89: #{tpu_custom_call.1} parent=71 // pred_check
          %p484 = pneg %p284
        $region90: #{tpu_custom_call.1} parent=71 // pred_check_branch
          %486 = sbr.rel (%p484) target = $region92
        $region91: #{tpu_custom_call.1} parent=71 // pred_region
          %488 = dma.done [#allocation9], 256
        $region92: #{tpu_custom_call.1} parent=71 // pred_fallthru
          _
        %s489 = sand.u32 %s40, 1
        %s490 = scalar_lea.sflag [#allocation3], %s489
        %s491 = sand.u32 %s40, 1
        %s492 = smul.addr %s491, 32
        %s493 = scalar_lea.vmem [#allocation2], %s492
        %p494 = pneg %p53
        %p495 = pneg %p50
        %p496 = pneg %p74
        %p497 = pneg %p71
        %p498 = pneg %p95
        %p499 = pneg %p92
        %p500 = pneg %p116
        %p501 = pneg %p113
        %p502 = pneg %p137
        %p503 = pneg %p134
        %p504 = pneg %p158
        %p505 = pneg %p155
        %p506 = pneg %p179
        %p507 = pneg %p176
        %p508 = pneg %p200
        %p509 = pneg %p197
        %p510 = pneg %p221
        %p511 = pneg %p218
        %p512 = pneg %p242
        %p513 = pneg %p239
        %p514 = pneg %p263
        %p515 = pneg %p260
        %p516 = pneg %p284
        %p517 = pneg %p281
        %p518 = pneg %p305
        %p519 = pneg %p302
        %p520 = pneg %p331
        %p521 = pneg %p328
        %s522 = sand.u32 %s318, 1
        %s523 = scalar_lea.sflag [#allocation4], %s522
        %s524 = sand.u32 %s318, 1
        %s525 = smul.addr %s524, 32
        %s526 = scalar_lea.vmem [#allocation11], %s525
        %v528 = vld [vmem:[%s463] sm:$0xff]
        %v529 = vld [vmem:[%s463 + $0x8] sm:$0xff]
        %v530 = vld [vmem:[%s463 + $0x10] sm:$0xff]
        %v531 = vld [vmem:[%s463 + $0x18] sm:$0xff]
        %532 = vxpose.xlu0.b32.start [1/16] %v528, 128
        %533 = vxpose.xlu0.b32.cont [2/16] %v529, 128
        %534 = vxpose.xlu0.b32.cont [3/16] %v530, 128
        %535 = vxpose.xlu0.b32.cont [4/16] %v531, 128
        %536 = vxpose.xlu0.b32.cont [5/16] 0.0, 128
        %537 = vxpose.xlu0.b32.cont [6/16] 0.0, 128
        %538 = vxpose.xlu0.b32.cont [7/16] 0.0, 128
        %539 = vxpose.xlu0.b32.cont [8/16] 0.0, 128
        %540 = vxpose.xlu0.b32.cont [9/16] 0.0, 128
        %541 = vxpose.xlu0.b32.cont [10/16] 0.0, 128
        %542 = vxpose.xlu0.b32.cont [11/16] 0.0, 128
        %543 = vxpose.xlu0.b32.cont [12/16] 0.0, 128
        %544 = vxpose.xlu0.b32.cont [13/16] 0.0, 128
        %545 = vxpose.xlu0.b32.cont [14/16] 0.0, 128
        %546 = vxpose.xlu0.b32.cont [15/16] 0.0, 128
        %547 = vxpose.xlu0.b32.end [16/16] 0.0, 128
        %v548 = vpop.trf.xlu0
        %v549 = vpop.trf.xlu0
        %v550 = vpop.trf.xlu0
        %v551 = vpop.trf.xlu0
        %v552 = vpop.trf.xlu0
        %v553 = vpop.trf.xlu0
        %v554 = vpop.trf.xlu0
        %v555 = vpop.trf.xlu0
        %v556 = vpop.trf.xlu0
        %v557 = vpop.trf.xlu0
        %v558 = vpop.trf.xlu0
        %v559 = vpop.trf.xlu0
        %v560 = vpop.trf.xlu0
        %v561 = vpop.trf.xlu0
        %v562 = vpop.trf.xlu0
        %v563 = vpop.trf.xlu0
        %v564 = vld [vmem:[%s5] sm:$0x1]
        %v565 = vld [vmem:[%s6] sm:$0x1]
        %vm566 = vcmask 261120
        %v567 = vsel %vm566, %v548, 0.0
        %568 = vadd.xlane.f32.xlu0 %v567
        %v569 = vpop.xlane.xlu0 %568
        %v570 = vsel %vm566, %v549, 0.0
        %571 = vadd.xlane.f32.xlu0 %v570
        %v572 = vpop.xlane.xlu0 %571
        %v573 = vsel %vm566, %v550, 0.0
        %574 = vadd.xlane.f32.xlu0 %v573
        %v575 = vpop.xlane.xlu0 %574
        %v576 = vsel %vm566, %v551, 0.0
        %577 = vadd.xlane.f32.xlu0 %v576
        %v578 = vpop.xlane.xlu0 %577
        %v579 = vsel %vm566, %v552, 0.0
        %580 = vadd.xlane.f32.xlu0 %v579
        %v581 = vpop.xlane.xlu0 %580
        %v582 = vsel %vm566, %v553, 0.0
        %583 = vadd.xlane.f32.xlu0 %v582
        %v584 = vpop.xlane.xlu0 %583
        %v585 = vsel %vm566, %v554, 0.0
        %586 = vadd.xlane.f32.xlu0 %v585
        %v587 = vpop.xlane.xlu0 %586
        %v588 = vsel %vm566, %v555, 0.0
        %589 = vadd.xlane.f32.xlu0 %v588
        %v590 = vpop.xlane.xlu0 %589
        %v591 = vrcp.pop 32.0
        %v592 = vmul.f32 32.0, %v591
        %v593 = vsub.f32 1.0, %v592
        %v594 = vmul.f32 %v591, %v593
        %v595 = vadd.f32 %v591, %v594
        %vm596 = vweird.f32 %v591
        %v597 = vsel %vm596, %v591, %v595
        %v598 = vmul.f32 %v569, %v597
        %v599 = vmul.f32 %v572, %v597
        %v600 = vmul.f32 %v575, %v597
        %v601 = vmul.f32 %v578, %v597
        %v602 = vmul.f32 %v581, %v597
        %v603 = vmul.f32 %v584, %v597
        %v604 = vmul.f32 %v587, %v597
        %v605 = vmul.f32 %v590, %v597
        %v606 = vsub.f32 %v548, %v598
        %v607 = vsub.f32 %v549, %v599
        %v608 = vsub.f32 %v550, %v600
        %v609 = vsub.f32 %v551, %v601
        %v610 = vsub.f32 %v552, %v602
        %v611 = vsub.f32 %v553, %v603
        %v612 = vsub.f32 %v554, %v604
        %v613 = vsub.f32 %v555, %v605
        %v614 = vmul.f32 %v606, %v606
        %v615 = vmul.f32 %v607, %v607
        %v616 = vmul.f32 %v608, %v608
        %v617 = vmul.f32 %v609, %v609
        %v618 = vmul.f32 %v610, %v610
        %v619 = vmul.f32 %v611, %v611
        %v620 = vmul.f32 %v612, %v612
        %v621 = vmul.f32 %v613, %v613
        %v622 = vsel %vm566, %v614, 0.0
        %623 = vadd.xlane.f32.xlu0 %v622
        %v624 = vpop.xlane.xlu0 %623
        %v625 = vsel %vm566, %v615, 0.0
        %626 = vadd.xlane.f32.xlu0 %v625
        %v627 = vpop.xlane.xlu0 %626
        %v628 = vsel %vm566, %v616, 0.0
        %629 = vadd.xlane.f32.xlu0 %v628
        %v630 = vpop.xlane.xlu0 %629
        %v631 = vsel %vm566, %v617, 0.0
        %632 = vadd.xlane.f32.xlu0 %v631
        %v633 = vpop.xlane.xlu0 %632
        %v634 = vsel %vm566, %v618, 0.0
        %635 = vadd.xlane.f32.xlu0 %v634
        %v636 = vpop.xlane.xlu0 %635
        %v637 = vsel %vm566, %v619, 0.0
        %638 = vadd.xlane.f32.xlu0 %v637
        %v639 = vpop.xlane.xlu0 %638
        %v640 = vsel %vm566, %v620, 0.0
        %641 = vadd.xlane.f32.xlu0 %v640
        %v642 = vpop.xlane.xlu0 %641
        %v643 = vsel %vm566, %v621, 0.0
        %644 = vadd.xlane.f32.xlu0 %v643
        %v645 = vpop.xlane.xlu0 %644
        %v646 = vmul.f32 %v624, %v597
        %v647 = vmul.f32 %v627, %v597
        %v648 = vmul.f32 %v630, %v597
        %v649 = vmul.f32 %v633, %v597
        %v650 = vmul.f32 %v636, %v597
        %v651 = vmul.f32 %v639, %v597
        %v652 = vmul.f32 %v642, %v597
        %v653 = vmul.f32 %v645, %v597
        %v654 = vadd.f32 %v646, 1e-05
        %v655 = vadd.f32 %v647, 1e-05
        %v656 = vadd.f32 %v648, 1e-05
        %v657 = vadd.f32 %v649, 1e-05
        %v658 = vadd.f32 %v650, 1e-05
        %v659 = vadd.f32 %v651, 1e-05
        %v660 = vadd.f32 %v652, 1e-05
        %v661 = vadd.f32 %v653, 1e-05
        %v662 = vrsqrt.pop %v654
        %v663 = vmul.f32 %v662, %v654
        %v664 = vmul.f32 %v663, %v662
        %v665 = vmul.f32 0.5, %v664
        %v666 = vsub.f32 1.5, %v665
        %v667 = vmul.f32 %v662, %v666
        %vm668 = vweird.f32 %v654
        %vm669 = vweird.f32 %v662
        %vm670 = vmor %vm668, %vm669
        %v671 = vsel %vm670, %v662, %v667
        %v672 = vrsqrt.pop %v655
        %v673 = vmul.f32 %v672, %v655
        %v674 = vmul.f32 %v673, %v672
        %v675 = vmul.f32 0.5, %v674
        %v676 = vsub.f32 1.5, %v675
        %v677 = vmul.f32 %v672, %v676
        %vm678 = vweird.f32 %v655
        %vm679 = vweird.f32 %v672
        %vm680 = vmor %vm678, %vm679
        %v681 = vsel %vm680, %v672, %v677
        %v682 = vrsqrt.pop %v656
        %v683 = vmul.f32 %v682, %v656
        %v684 = vmul.f32 %v683, %v682
        %v685 = vmul.f32 0.5, %v684
        %v686 = vsub.f32 1.5, %v685
        %v687 = vmul.f32 %v682, %v686
        %vm688 = vweird.f32 %v656
        %vm689 = vweird.f32 %v682
        %vm690 = vmor %vm688, %vm689
        %v691 = vsel %vm690, %v682, %v687
        %v692 = vrsqrt.pop %v657
        %v693 = vmul.f32 %v692, %v657
        %v694 = vmul.f32 %v693, %v692
        %v695 = vmul.f32 0.5, %v694
        %v696 = vsub.f32 1.5, %v695
        %v697 = vmul.f32 %v692, %v696
        %vm698 = vweird.f32 %v657
        %vm699 = vweird.f32 %v692
        %vm700 = vmor %vm698, %vm699
        %v701 = vsel %vm700, %v692, %v697
        %v702 = vrsqrt.pop %v658
        %v703 = vmul.f32 %v702, %v658
        %v704 = vmul.f32 %v703, %v702
        %v705 = vmul.f32 0.5, %v704
        %v706 = vsub.f32 1.5, %v705
        %v707 = vmul.f32 %v702, %v706
        %vm708 = vweird.f32 %v658
        %vm709 = vweird.f32 %v702
        %vm710 = vmor %vm708, %vm709
        %v711 = vsel %vm710, %v702, %v707
        %v712 = vrsqrt.pop %v659
        %v713 = vmul.f32 %v712, %v659
        %v714 = vmul.f32 %v713, %v712
        %v715 = vmul.f32 0.5, %v714
        %v716 = vsub.f32 1.5, %v715
        %v717 = vmul.f32 %v712, %v716
        %vm718 = vweird.f32 %v659
        %vm719 = vweird.f32 %v712
        %vm720 = vmor %vm718, %vm719
        %v721 = vsel %vm720, %v712, %v717
        %v722 = vrsqrt.pop %v660
        %v723 = vmul.f32 %v722, %v660
        %v724 = vmul.f32 %v723, %v722
        %v725 = vmul.f32 0.5, %v724
        %v726 = vsub.f32 1.5, %v725
        %v727 = vmul.f32 %v722, %v726
        %vm728 = vweird.f32 %v660
        %vm729 = vweird.f32 %v722
        %vm730 = vmor %vm728, %vm729
        %v731 = vsel %vm730, %v722, %v727
        %v732 = vrsqrt.pop %v661
        %v733 = vmul.f32 %v732, %v661
        %v734 = vmul.f32 %v733, %v732
        %v735 = vmul.f32 0.5, %v734
        %v736 = vsub.f32 1.5, %v735
        %v737 = vmul.f32 %v732, %v736
        %vm738 = vweird.f32 %v661
        %vm739 = vweird.f32 %v732
        %vm740 = vmor %vm738, %vm739
        %v741 = vsel %vm740, %v732, %v737
        %v742 = vmul.f32 %v606, %v671
        %v743 = vmul.f32 %v607, %v681
        %v744 = vmul.f32 %v608, %v691
        %v745 = vmul.f32 %v609, %v701
        %v746 = vmul.f32 %v610, %v711
        %v747 = vmul.f32 %v611, %v721
        %v748 = vmul.f32 %v612, %v731
        %v749 = vmul.f32 %v613, %v741
        %v751 = vperm.slane %v564, 0
        %v753 = vmul.f32 %v742, %v751
        %v754 = vmul.f32 %v743, %v751
        %v755 = vmul.f32 %v744, %v751
        %v756 = vmul.f32 %v745, %v751
        %v757 = vmul.f32 %v746, %v751
        %v758 = vmul.f32 %v747, %v751
        %v759 = vmul.f32 %v748, %v751
        %v760 = vmul.f32 %v749, %v751
        %v762 = vperm.slane %v565, 0
        %v764 = vadd.f32 %v753, %v762
        %v765 = vadd.f32 %v754, %v762
        %v766 = vadd.f32 %v755, %v762
        %v767 = vadd.f32 %v756, %v762
        %v768 = vadd.f32 %v757, %v762
        %v769 = vadd.f32 %v758, %v762
        %v770 = vadd.f32 %v759, %v762
        %v771 = vadd.f32 %v760, %v762
        %v772 = vpack.c.bf16 %v765, %v764
        %v773 = vpack.c.bf16 %v767, %v766
        %v774 = vpack.c.bf16 %v769, %v768
        %v775 = vpack.c.bf16 %v771, %v770
        %v776 = vld [vmem:[#allocation5] sm:$0xf]
        %v777 = vld [vmem:[#allocation5 + $0x4] sm:$0xf]
        %v778 = vld [vmem:[#allocation5 + $0x8] sm:$0xf]
        %v779 = vld [vmem:[#allocation5 + $0xc] sm:$0xf]
        %v780 = vld [vmem:[%s2] sm:$0x1]
        %v782 = vperm.slane %v780, 0
        %v788 = vunpack.c.l.b16 %v776
        %v789 = vunpack.c.l.b16 %v777
        %v790 = vunpack.c.l.b16 %v778
        %v791 = vunpack.c.l.b16 %v779
        %v792 = vpack.c.b16 %v789, %v788
        %v793 = vpack.c.b16 %v791, %v790
        %v797 = vsel %vm566, %v772, 0
        %v800 = vsel %vm566, %v773, 0
        %v803 = vsel %vm566, %v774, 0
        %v806 = vsel %vm566, %v775, 0
        %808 = vmatpush.bf16.msra.mxu0 0
        %809 = vmatpush.bf16.msra.mxu0 0
        %810 = vmatpush.bf16.msra.mxu0 0
        %811 = vmatpush.bf16.msra.mxu0 0
        %812 = vmatpush.bf16.msra.mxu0 0
        %813 = vmatpush.bf16.msra.mxu0 0
        %814 = vmatpush.bf16.msra.mxu0 %v793
        %815 = vmatpush.bf16.msra.mxu0 %v792
        %816 = vmatmul.bf16.gmra.mxu0 %v797
        %v817 = vpop.f32.mrf.mxu0
        %v818 = vadd.f32 %v782, %v817
        %v819 = vpop.f32.mrf.mxu0
        %v820 = vadd.f32 %v782, %v819
        %821 = vmatmul.bf16.gmra.mxu0 %v800
        %v822 = vpop.f32.mrf.mxu0
        %v823 = vadd.f32 %v782, %v822
        %v824 = vpop.f32.mrf.mxu0
        %v825 = vadd.f32 %v782, %v824
        %826 = vmatmul.bf16.gmra.mxu0 %v803
        %v827 = vpop.f32.mrf.mxu0
        %v828 = vadd.f32 %v782, %v827
        %v829 = vpop.f32.mrf.mxu0
        %v830 = vadd.f32 %v782, %v829
        %831 = vmatmul.bf16.gmra.mxu0 %v806
        %v832 = vpop.f32.mrf.mxu0
        %v833 = vadd.f32 %v782, %v832
        %v834 = vpop.f32.mrf.mxu0
        %v835 = vadd.f32 %v782, %v834
        %836 = vdwg.mxu0
        %845 = vrot.lane.b32.xlu0 %v818, 96
        %v846 = vpop.permute.xlu0 %845
        %847 = vrot.lane.b32.xlu0 %v820, 96
        %v848 = vpop.permute.xlu0 %847
        %849 = vrot.lane.b32.xlu0 %v823, 96
        %v850 = vpop.permute.xlu0 %849
        %851 = vrot.lane.b32.xlu0 %v825, 96
        %v852 = vpop.permute.xlu0 %851
        %853 = vrot.lane.b32.xlu0 %v828, 96
        %v854 = vpop.permute.xlu0 %853
        %855 = vrot.lane.b32.xlu0 %v830, 96
        %v856 = vpop.permute.xlu0 %855
        %857 = vrot.lane.b32.xlu0 %v833, 96
        %v858 = vpop.permute.xlu0 %857
        %859 = vrot.lane.b32.xlu0 %v835, 96
        %v860 = vpop.permute.xlu0 %859
        %869 = vxpose.xlu0.b32.start [1/16] %v846, 128
        %870 = vxpose.xlu0.b32.cont [2/16] %v848, 128
        %871 = vxpose.xlu0.b32.cont [3/16] %v850, 128
        %872 = vxpose.xlu0.b32.cont [4/16] %v852, 128
        %873 = vxpose.xlu0.b32.cont [5/16] %v854, 128
        %874 = vxpose.xlu0.b32.cont [6/16] %v856, 128
        %875 = vxpose.xlu0.b32.cont [7/16] %v858, 128
        %876 = vxpose.xlu0.b32.cont [8/16] %v860, 128
        %877 = vxpose.xlu0.b32.cont [9/16] 0.0, 128
        %878 = vxpose.xlu0.b32.cont [10/16] 0.0, 128
        %879 = vxpose.xlu0.b32.cont [11/16] 0.0, 128
        %880 = vxpose.xlu0.b32.cont [12/16] 0.0, 128
        %881 = vxpose.xlu0.b32.cont [13/16] 0.0, 128
        %882 = vxpose.xlu0.b32.cont [14/16] 0.0, 128
        %883 = vxpose.xlu0.b32.cont [15/16] 0.0, 128
        %884 = vxpose.xlu0.b32.end [16/16] 0.0, 128
        %v885 = vpop.trf.xlu0
        %v886 = vpop.trf.xlu0
        %v887 = vpop.trf.xlu0
        %v888 = vpop.trf.xlu0
        %v889 = vpop.trf.xlu0
        %v890 = vpop.trf.xlu0
        %v891 = vpop.trf.xlu0
        %v892 = vpop.trf.xlu0
        %v893 = vpop.trf.xlu0
        %v894 = vpop.trf.xlu0
        %v895 = vpop.trf.xlu0
        %v896 = vpop.trf.xlu0
        %v897 = vpop.trf.xlu0
        %v898 = vpop.trf.xlu0
        %v899 = vpop.trf.xlu0
        %v900 = vpop.trf.xlu0
        %901 = vrot.lane.b32.xlu0 %v818, 120
        %v902 = vpop.permute.xlu0 %901
        %903 = vrot.lane.b32.xlu0 %v820, 120
        %v904 = vpop.permute.xlu0 %903
        %905 = vrot.lane.b32.xlu0 %v823, 120
        %v906 = vpop.permute.xlu0 %905
        %907 = vrot.lane.b32.xlu0 %v825, 120
        %v908 = vpop.permute.xlu0 %907
        %909 = vrot.lane.b32.xlu0 %v828, 120
        %v910 = vpop.permute.xlu0 %909
        %911 = vrot.lane.b32.xlu0 %v830, 120
        %v912 = vpop.permute.xlu0 %911
        %913 = vrot.lane.b32.xlu0 %v833, 120
        %v914 = vpop.permute.xlu0 %913
        %915 = vrot.lane.b32.xlu0 %v835, 120
        %v916 = vpop.permute.xlu0 %915
        %925 = vrot.lane.b32.xlu0 %v818, 112
        %v926 = vpop.permute.xlu0 %925
        %927 = vrot.lane.b32.xlu0 %v820, 112
        %v928 = vpop.permute.xlu0 %927
        %929 = vrot.lane.b32.xlu0 %v823, 112
        %v930 = vpop.permute.xlu0 %929
        %931 = vrot.lane.b32.xlu0 %v825, 112
        %v932 = vpop.permute.xlu0 %931
        %933 = vrot.lane.b32.xlu0 %v828, 112
        %v934 = vpop.permute.xlu0 %933
        %935 = vrot.lane.b32.xlu0 %v830, 112
        %v936 = vpop.permute.xlu0 %935
        %937 = vrot.lane.b32.xlu0 %v833, 112
        %v938 = vpop.permute.xlu0 %937
        %939 = vrot.lane.b32.xlu0 %v835, 112
        %v940 = vpop.permute.xlu0 %939
        %949 = vrot.lane.b32.xlu0 %v818, 104
        %v950 = vpop.permute.xlu0 %949
        %951 = vrot.lane.b32.xlu0 %v820, 104
        %v952 = vpop.permute.xlu0 %951
        %953 = vrot.lane.b32.xlu0 %v823, 104
        %v954 = vpop.permute.xlu0 %953
        %955 = vrot.lane.b32.xlu0 %v825, 104
        %v956 = vpop.permute.xlu0 %955
        %957 = vrot.lane.b32.xlu0 %v828, 104
        %v958 = vpop.permute.xlu0 %957
        %959 = vrot.lane.b32.xlu0 %v830, 104
        %v960 = vpop.permute.xlu0 %959
        %961 = vrot.lane.b32.xlu0 %v833, 104
        %v962 = vpop.permute.xlu0 %961
        %963 = vrot.lane.b32.xlu0 %v835, 104
        %v964 = vpop.permute.xlu0 %963
        %v973 = vpack.c.bf16 %v818, %v818
        %v974 = vpack.c.bf16 %v820, %v820
        %v975 = vpack.c.bf16 %v823, %v823
        %v976 = vpack.c.bf16 %v825, %v825
        %v977 = vpack.c.bf16 %v828, %v828
        %v978 = vpack.c.bf16 %v830, %v830
        %v979 = vpack.c.bf16 %v833, %v833
        %v980 = vpack.c.bf16 %v835, %v835
        %v981 = vpack.c.bf16 %v902, %v902
        %v982 = vpack.c.bf16 %v904, %v904
        %v983 = vpack.c.bf16 %v906, %v906
        %v984 = vpack.c.bf16 %v908, %v908
        %v985 = vpack.c.bf16 %v910, %v910
        %v986 = vpack.c.bf16 %v912, %v912
        %v987 = vpack.c.bf16 %v914, %v914
        %v988 = vpack.c.bf16 %v916, %v916
        %v989 = vpack.c.bf16 %v926, %v926
        %v990 = vpack.c.bf16 %v928, %v928
        %v991 = vpack.c.bf16 %v930, %v930
        %v992 = vpack.c.bf16 %v932, %v932
        %v993 = vpack.c.bf16 %v934, %v934
        %v994 = vpack.c.bf16 %v936, %v936
        %v995 = vpack.c.bf16 %v938, %v938
        %v996 = vpack.c.bf16 %v940, %v940
        %v997 = vpack.c.bf16 %v950, %v950
        %v998 = vpack.c.bf16 %v952, %v952
        %v999 = vpack.c.bf16 %v954, %v954
        %v1000 = vpack.c.bf16 %v956, %v956
        %v1001 = vpack.c.bf16 %v958, %v958
        %v1002 = vpack.c.bf16 %v960, %v960
        %v1003 = vpack.c.bf16 %v962, %v962
        %v1004 = vpack.c.bf16 %v964, %v964
        %v1005 = vpack.c.bf16 %v885, %v885
        %v1006 = vpack.c.bf16 %v886, %v886
        %v1007 = vpack.c.bf16 %v887, %v887
        %v1008 = vpack.c.bf16 %v888, %v888
        %v1017 = vunpack.c.l.b16 %v973
        %v1018 = vunpack.c.l.b16 %v974
        %v1019 = vunpack.c.l.b16 %v975
        %v1020 = vunpack.c.l.b16 %v976
        %v1021 = vunpack.c.l.b16 %v977
        %v1022 = vunpack.c.l.b16 %v978
        %v1023 = vunpack.c.l.b16 %v979
        %v1024 = vunpack.c.l.b16 %v980
        %v1025 = vpack.c.b16 %v1018, %v1017
        %v1026 = vpack.c.b16 %v1020, %v1019
        %v1027 = vpack.c.b16 %v1022, %v1021
        %v1028 = vpack.c.b16 %v1024, %v1023
        %vm1029 = vcmask 64512
        %v1031 = vsel %vm1029, %v1025, 0
        %v1034 = vsel %vm1029, %v1026, 0
        %v1037 = vsel %vm1029, %v1027, 0
        %v1040 = vsel %vm1029, %v1028, 0
        %vm1042 = vcmask 1043456
        %v1044 = vsel %vm1042, %v1005, 0
        %1046 = vmatpush.bf16.msra.mxu0 0
        %1047 = vmatpush.bf16.msra.mxu0 0
        %1048 = vmatpush.bf16.msra.mxu0 0
        %1049 = vmatpush.bf16.msra.mxu0 0
        %1050 = vmatpush.bf16.msra.mxu0 0
        %1051 = vmatpush.bf16.msra.mxu0 0
        %1052 = vmatpush.bf16.msra.mxu0 0
        %1053 = vmatpush.bf16.msra.mxu0 %v1044
        %1054 = vmatmul.bf16.gmra.mxu0 %v1031
        %v1055 = vpop.f32.mrf.mxu0
        %v1056 = vadd.f32 0.0, %v1055
        %v1057 = vpop.f32.mrf.mxu0
        %v1058 = vadd.f32 0.0, %v1057
        %1059 = vmatmul.bf16.gmra.mxu0 %v1034
        %v1060 = vpop.f32.mrf.mxu0
        %v1061 = vadd.f32 0.0, %v1060
        %v1062 = vpop.f32.mrf.mxu0
        %v1063 = vadd.f32 0.0, %v1062
        %1064 = vmatmul.bf16.gmra.mxu0 %v1037
        %v1065 = vpop.f32.mrf.mxu0
        %v1066 = vadd.f32 0.0, %v1065
        %v1067 = vpop.f32.mrf.mxu0
        %v1068 = vadd.f32 0.0, %v1067
        %1069 = vmatmul.bf16.gmra.mxu0 %v1040
        %v1070 = vpop.f32.mrf.mxu0
        %v1071 = vadd.f32 0.0, %v1070
        %v1072 = vpop.f32.mrf.mxu0
        %v1073 = vadd.f32 0.0, %v1072
        %1074 = vdwg.mxu0
        %v1083 = vunpack.c.l.b16 %v981
        %v1084 = vunpack.c.l.b16 %v982
        %v1085 = vunpack.c.l.b16 %v983
        %v1086 = vunpack.c.l.b16 %v984
        %v1087 = vunpack.c.l.b16 %v985
        %v1088 = vunpack.c.l.b16 %v986
        %v1089 = vunpack.c.l.b16 %v987
        %v1090 = vunpack.c.l.b16 %v988
        %v1091 = vpack.c.b16 %v1084, %v1083
        %v1092 = vpack.c.b16 %v1086, %v1085
        %v1093 = vpack.c.b16 %v1088, %v1087
        %v1094 = vpack.c.b16 %v1090, %v1089
        %v1096 = vsel %vm1029, %v1091, 0
        %v1099 = vsel %vm1029, %v1092, 0
        %v1102 = vsel %vm1029, %v1093, 0
        %v1105 = vsel %vm1029, %v1094, 0
        %v1108 = vsel %vm1042, %v1006, 0
        %1110 = vmatpush.bf16.msra.mxu0 0
        %1111 = vmatpush.bf16.msra.mxu0 0
        %1112 = vmatpush.bf16.msra.mxu0 0
        %1113 = vmatpush.bf16.msra.mxu0 0
        %1114 = vmatpush.bf16.msra.mxu0 0
        %1115 = vmatpush.bf16.msra.mxu0 0
        %1116 = vmatpush.bf16.msra.mxu0 0
        %1117 = vmatpush.bf16.msra.mxu0 %v1108
        %1118 = vmatmul.bf16.gmra.mxu0 %v1096
        %v1119 = vpop.f32.mrf.mxu0
        %v1120 = vadd.f32 0.0, %v1119
        %v1121 = vpop.f32.mrf.mxu0
        %v1122 = vadd.f32 0.0, %v1121
        %1123 = vmatmul.bf16.gmra.mxu0 %v1099
        %v1124 = vpop.f32.mrf.mxu0
        %v1125 = vadd.f32 0.0, %v1124
        %v1126 = vpop.f32.mrf.mxu0
        %v1127 = vadd.f32 0.0, %v1126
        %1128 = vmatmul.bf16.gmra.mxu0 %v1102
        %v1129 = vpop.f32.mrf.mxu0
        %v1130 = vadd.f32 0.0, %v1129
        %v1131 = vpop.f32.mrf.mxu0
        %v1132 = vadd.f32 0.0, %v1131
        %1133 = vmatmul.bf16.gmra.mxu0 %v1105
        %v1134 = vpop.f32.mrf.mxu0
        %v1135 = vadd.f32 0.0, %v1134
        %v1136 = vpop.f32.mrf.mxu0
        %v1137 = vadd.f32 0.0, %v1136
        %1138 = vdwg.mxu0
        %v1147 = vunpack.c.l.b16 %v989
        %v1148 = vunpack.c.l.b16 %v990
        %v1149 = vunpack.c.l.b16 %v991
        %v1150 = vunpack.c.l.b16 %v992
        %v1151 = vunpack.c.l.b16 %v993
        %v1152 = vunpack.c.l.b16 %v994
        %v1153 = vunpack.c.l.b16 %v995
        %v1154 = vunpack.c.l.b16 %v996
        %v1155 = vpack.c.b16 %v1148, %v1147
        %v1156 = vpack.c.b16 %v1150, %v1149
        %v1157 = vpack.c.b16 %v1152, %v1151
        %v1158 = vpack.c.b16 %v1154, %v1153
        %v1160 = vsel %vm1029, %v1155, 0
        %v1163 = vsel %vm1029, %v1156, 0
        %v1166 = vsel %vm1029, %v1157, 0
        %v1169 = vsel %vm1029, %v1158, 0
        %v1172 = vsel %vm1042, %v1007, 0
        %1174 = vmatpush.bf16.msra.mxu0 0
        %1175 = vmatpush.bf16.msra.mxu0 0
        %1176 = vmatpush.bf16.msra.mxu0 0
        %1177 = vmatpush.bf16.msra.mxu0 0
        %1178 = vmatpush.bf16.msra.mxu0 0
        %1179 = vmatpush.bf16.msra.mxu0 0
        %1180 = vmatpush.bf16.msra.mxu0 0
        %1181 = vmatpush.bf16.msra.mxu0 %v1172
        %1182 = vmatmul.bf16.gmra.mxu0 %v1160
        %v1183 = vpop.f32.mrf.mxu0
        %v1184 = vadd.f32 0.0, %v1183
        %v1185 = vpop.f32.mrf.mxu0
        %v1186 = vadd.f32 0.0, %v1185
        %1187 = vmatmul.bf16.gmra.mxu0 %v1163
        %v1188 = vpop.f32.mrf.mxu0
        %v1189 = vadd.f32 0.0, %v1188
        %v1190 = vpop.f32.mrf.mxu0
        %v1191 = vadd.f32 0.0, %v1190
        %1192 = vmatmul.bf16.gmra.mxu0 %v1166
        %v1193 = vpop.f32.mrf.mxu0
        %v1194 = vadd.f32 0.0, %v1193
        %v1195 = vpop.f32.mrf.mxu0
        %v1196 = vadd.f32 0.0, %v1195
        %1197 = vmatmul.bf16.gmra.mxu0 %v1169
        %v1198 = vpop.f32.mrf.mxu0
        %v1199 = vadd.f32 0.0, %v1198
        %v1200 = vpop.f32.mrf.mxu0
        %v1201 = vadd.f32 0.0, %v1200
        %1202 = vdwg.mxu0
        %v1211 = vunpack.c.l.b16 %v997
        %v1212 = vunpack.c.l.b16 %v998
        %v1213 = vunpack.c.l.b16 %v999
        %v1214 = vunpack.c.l.b16 %v1000
        %v1215 = vunpack.c.l.b16 %v1001
        %v1216 = vunpack.c.l.b16 %v1002
        %v1217 = vunpack.c.l.b16 %v1003
        %v1218 = vunpack.c.l.b16 %v1004
        %v1219 = vpack.c.b16 %v1212, %v1211
        %v1220 = vpack.c.b16 %v1214, %v1213
        %v1221 = vpack.c.b16 %v1216, %v1215
        %v1222 = vpack.c.b16 %v1218, %v1217
        %v1224 = vsel %vm1029, %v1219, 0
        %v1227 = vsel %vm1029, %v1220, 0
        %v1230 = vsel %vm1029, %v1221, 0
        %v1233 = vsel %vm1029, %v1222, 0
        %v1236 = vsel %vm1042, %v1008, 0
        %1238 = vmatpush.bf16.msra.mxu0 0
        %1239 = vmatpush.bf16.msra.mxu0 0
        %1240 = vmatpush.bf16.msra.mxu0 0
        %1241 = vmatpush.bf16.msra.mxu0 0
        %1242 = vmatpush.bf16.msra.mxu0 0
        %1243 = vmatpush.bf16.msra.mxu0 0
        %1244 = vmatpush.bf16.msra.mxu0 0
        %1245 = vmatpush.bf16.msra.mxu0 %v1236
        %1246 = vmatmul.bf16.gmra.mxu0 %v1224
        %v1247 = vpop.f32.mrf.mxu0
        %v1248 = vadd.f32 0.0, %v1247
        %v1249 = vpop.f32.mrf.mxu0
        %v1250 = vadd.f32 0.0, %v1249
        %1251 = vmatmul.bf16.gmra.mxu0 %v1227
        %v1252 = vpop.f32.mrf.mxu0
        %v1253 = vadd.f32 0.0, %v1252
        %v1254 = vpop.f32.mrf.mxu0
        %v1255 = vadd.f32 0.0, %v1254
        %1256 = vmatmul.bf16.gmra.mxu0 %v1230
        %v1257 = vpop.f32.mrf.mxu0
        %v1258 = vadd.f32 0.0, %v1257
        %v1259 = vpop.f32.mrf.mxu0
        %v1260 = vadd.f32 0.0, %v1259
        %1261 = vmatmul.bf16.gmra.mxu0 %v1233
        %v1262 = vpop.f32.mrf.mxu0
        %v1263 = vadd.f32 0.0, %v1262
        %v1264 = vpop.f32.mrf.mxu0
        %v1265 = vadd.f32 0.0, %v1264
        %1266 = vdwg.mxu0
        %vm1267 = vcmask 523264
        %v1268 = vsel %vm1267, %v1056, -inf
        %1269 = vmax.xlane.f32.xlu0 %v1268
        %v1270 = vpop.xlane.xlu0 %1269
        %v1271 = vsel %vm1267, %v1058, -inf
        %1272 = vmax.xlane.f32.xlu0 %v1271
        %v1273 = vpop.xlane.xlu0 %1272
        %v1274 = vsel %vm1267, %v1061, -inf
        %1275 = vmax.xlane.f32.xlu0 %v1274
        %v1276 = vpop.xlane.xlu0 %1275
        %v1277 = vsel %vm1267, %v1063, -inf
        %1278 = vmax.xlane.f32.xlu0 %v1277
        %v1279 = vpop.xlane.xlu0 %1278
        %v1280 = vsel %vm1267, %v1066, -inf
        %1281 = vmax.xlane.f32.xlu0 %v1280
        %v1282 = vpop.xlane.xlu0 %1281
        %v1283 = vsel %vm1267, %v1068, -inf
        %1284 = vmax.xlane.f32.xlu0 %v1283
        %v1285 = vpop.xlane.xlu0 %1284
        %v1286 = vsel %vm1267, %v1071, -inf
        %1287 = vmax.xlane.f32.xlu0 %v1286
        %v1288 = vpop.xlane.xlu0 %1287
        %v1289 = vsel %vm1267, %v1073, -inf
        %1290 = vmax.xlane.f32.xlu0 %v1289
        %v1291 = vpop.xlane.xlu0 %1290
        %v1292 = vsel %vm1267, %v1120, -inf
        %1293 = vmax.xlane.f32.xlu0 %v1292
        %v1294 = vpop.xlane.xlu0 %1293
        %v1295 = vsel %vm1267, %v1122, -inf
        %1296 = vmax.xlane.f32.xlu0 %v1295
        %v1297 = vpop.xlane.xlu0 %1296
        %v1298 = vsel %vm1267, %v1125, -inf
        %1299 = vmax.xlane.f32.xlu0 %v1298
        %v1300 = vpop.xlane.xlu0 %1299
        %v1301 = vsel %vm1267, %v1127, -inf
        %1302 = vmax.xlane.f32.xlu0 %v1301
        %v1303 = vpop.xlane.xlu0 %1302
        %v1304 = vsel %vm1267, %v1130, -inf
        %1305 = vmax.xlane.f32.xlu0 %v1304
        %v1306 = vpop.xlane.xlu0 %1305
        %v1307 = vsel %vm1267, %v1132, -inf
        %1308 = vmax.xlane.f32.xlu0 %v1307
        %v1309 = vpop.xlane.xlu0 %1308
        %v1310 = vsel %vm1267, %v1135, -inf
        %1311 = vmax.xlane.f32.xlu0 %v1310
        %v1312 = vpop.xlane.xlu0 %1311
        %v1313 = vsel %vm1267, %v1137, -inf
        %1314 = vmax.xlane.f32.xlu0 %v1313
        %v1315 = vpop.xlane.xlu0 %1314
        %v1316 = vsel %vm1267, %v1184, -inf
        %1317 = vmax.xlane.f32.xlu0 %v1316
        %v1318 = vpop.xlane.xlu0 %1317
        %v1319 = vsel %vm1267, %v1186, -inf
        %1320 = vmax.xlane.f32.xlu0 %v1319
        %v1321 = vpop.xlane.xlu0 %1320
        %v1322 = vsel %vm1267, %v1189, -inf
        %1323 = vmax.xlane.f32.xlu0 %v1322
        %v1324 = vpop.xlane.xlu0 %1323
        %v1325 = vsel %vm1267, %v1191, -inf
        %1326 = vmax.xlane.f32.xlu0 %v1325
        %v1327 = vpop.xlane.xlu0 %1326
        %v1328 = vsel %vm1267, %v1194, -inf
        %1329 = vmax.xlane.f32.xlu0 %v1328
        %v1330 = vpop.xlane.xlu0 %1329
        %v1331 = vsel %vm1267, %v1196, -inf
        %1332 = vmax.xlane.f32.xlu0 %v1331
        %v1333 = vpop.xlane.xlu0 %1332
        %v1334 = vsel %vm1267, %v1199, -inf
        %1335 = vmax.xlane.f32.xlu0 %v1334
        %v1336 = vpop.xlane.xlu0 %1335
        %v1337 = vsel %vm1267, %v1201, -inf
        %1338 = vmax.xlane.f32.xlu0 %v1337
        %v1339 = vpop.xlane.xlu0 %1338
        %v1340 = vsel %vm1267, %v1248, -inf
        %1341 = vmax.xlane.f32.xlu0 %v1340
        %v1342 = vpop.xlane.xlu0 %1341
        %v1343 = vsel %vm1267, %v1250, -inf
        %1344 = vmax.xlane.f32.xlu0 %v1343
        %v1345 = vpop.xlane.xlu0 %1344
        %v1346 = vsel %vm1267, %v1253, -inf
        %1347 = vmax.xlane.f32.xlu0 %v1346
        %v1348 = vpop.xlane.xlu0 %1347
        %v1349 = vsel %vm1267, %v1255, -inf
        %1350 = vmax.xlane.f32.xlu0 %v1349
        %v1351 = vpop.xlane.xlu0 %1350
        %v1352 = vsel %vm1267, %v1258, -inf
        %1353 = vmax.xlane.f32.xlu0 %v1352
        %v1354 = vpop.xlane.xlu0 %1353
        %v1355 = vsel %vm1267, %v1260, -inf
        %1356 = vmax.xlane.f32.xlu0 %v1355
        %v1357 = vpop.xlane.xlu0 %1356
        %v1358 = vsel %vm1267, %v1263, -inf
        %1359 = vmax.xlane.f32.xlu0 %v1358
        %v1360 = vpop.xlane.xlu0 %1359
        %v1361 = vsel %vm1267, %v1265, -inf
        %1362 = vmax.xlane.f32.xlu0 %v1361
        %v1363 = vpop.xlane.xlu0 %1362
        %v1364 = vsub.f32 %v1056, %v1270
        %v1365 = vsub.f32 %v1058, %v1273
        %v1366 = vsub.f32 %v1061, %v1276
        %v1367 = vsub.f32 %v1063, %v1279
        %v1368 = vsub.f32 %v1066, %v1282
        %v1369 = vsub.f32 %v1068, %v1285
        %v1370 = vsub.f32 %v1071, %v1288
        %v1371 = vsub.f32 %v1073, %v1291
        %v1372 = vsub.f32 %v1120, %v1294
        %v1373 = vsub.f32 %v1122, %v1297
        %v1374 = vsub.f32 %v1125, %v1300
        %v1375 = vsub.f32 %v1127, %v1303
        %v1376 = vsub.f32 %v1130, %v1306
        %v1377 = vsub.f32 %v1132, %v1309
        %v1378 = vsub.f32 %v1135, %v1312
        %v1379 = vsub.f32 %v1137, %v1315
        %v1380 = vsub.f32 %v1184, %v1318
        %v1381 = vsub.f32 %v1186, %v1321
        %v1382 = vsub.f32 %v1189, %v1324
        %v1383 = vsub.f32 %v1191, %v1327
        %v1384 = vsub.f32 %v1194, %v1330
        %v1385 = vsub.f32 %v1196, %v1333
        %v1386 = vsub.f32 %v1199, %v1336
        %v1387 = vsub.f32 %v1201, %v1339
        %v1388 = vsub.f32 %v1248, %v1342
        %v1389 = vsub.f32 %v1250, %v1345
        %v1390 = vsub.f32 %v1253, %v1348
        %v1391 = vsub.f32 %v1255, %v1351
        %v1392 = vsub.f32 %v1258, %v1354
        %v1393 = vsub.f32 %v1260, %v1357
        %v1394 = vsub.f32 %v1263, %v1360
        %v1395 = vsub.f32 %v1265, %v1363
        %v1396 = vmul.f32 %v1364, 1.442695
        %v1397 = vpow.pop %v1396
        %v1398 = vmul.f32 %v1365, 1.442695
        %v1399 = vpow.pop %v1398
        %v1400 = vmul.f32 %v1366, 1.442695
        %v1401 = vpow.pop %v1400
        %v1402 = vmul.f32 %v1367, 1.442695
        %v1403 = vpow.pop %v1402
        %v1404 = vmul.f32 %v1368, 1.442695
        %v1405 = vpow.pop %v1404
        %v1406 = vmul.f32 %v1369, 1.442695
        %v1407 = vpow.pop %v1406
        %v1408 = vmul.f32 %v1370, 1.442695
        %v1409 = vpow.pop %v1408
        %v1410 = vmul.f32 %v1371, 1.442695
        %v1411 = vpow.pop %v1410
        %v1412 = vmul.f32 %v1372, 1.442695
        %v1413 = vpow.pop %v1412
        %v1414 = vmul.f32 %v1373, 1.442695
        %v1415 = vpow.pop %v1414
        %v1416 = vmul.f32 %v1374, 1.442695
        %v1417 = vpow.pop %v1416
        %v1418 = vmul.f32 %v1375, 1.442695
        %v1419 = vpow.pop %v1418
        %v1420 = vmul.f32 %v1376, 1.442695
        %v1421 = vpow.pop %v1420
        %v1422 = vmul.f32 %v1377, 1.442695
        %v1423 = vpow.pop %v1422
        %v1424 = vmul.f32 %v1378, 1.442695
        %v1425 = vpow.pop %v1424
        %v1426 = vmul.f32 %v1379, 1.442695
        %v1427 = vpow.pop %v1426
        %v1428 = vmul.f32 %v1380, 1.442695
        %v1429 = vpow.pop %v1428
        %v1430 = vmul.f32 %v1381, 1.442695
        %v1431 = vpow.pop %v1430
        %v1432 = vmul.f32 %v1382, 1.442695
        %v1433 = vpow.pop %v1432
        %v1434 = vmul.f32 %v1383, 1.442695
        %v1435 = vpow.pop %v1434
        %v1436 = vmul.f32 %v1384, 1.442695
        %v1437 = vpow.pop %v1436
        %v1438 = vmul.f32 %v1385, 1.442695
        %v1439 = vpow.pop %v1438
        %v1440 = vmul.f32 %v1386, 1.442695
        %v1441 = vpow.pop %v1440
        %v1442 = vmul.f32 %v1387, 1.442695
        %v1443 = vpow.pop %v1442
        %v1444 = vmul.f32 %v1388, 1.442695
        %v1445 = vpow.pop %v1444
        %v1446 = vmul.f32 %v1389, 1.442695
        %v1447 = vpow.pop %v1446
        %v1448 = vmul.f32 %v1390, 1.442695
        %v1449 = vpow.pop %v1448
        %v1450 = vmul.f32 %v1391, 1.442695
        %v1451 = vpow.pop %v1450
        %v1452 = vmul.f32 %v1392, 1.442695
        %v1453 = vpow.pop %v1452
        %v1454 = vmul.f32 %v1393, 1.442695
        %v1455 = vpow.pop %v1454
        %v1456 = vmul.f32 %v1394, 1.442695
        %v1457 = vpow.pop %v1456
        %v1458 = vmul.f32 %v1395, 1.442695
        %v1459 = vpow.pop %v1458
        %v1460 = vsel %vm1267, %v1397, 0.0
        %1461 = vadd.xlane.f32.xlu0 %v1460
        %v1462 = vpop.xlane.xlu0 %1461
        %v1463 = vsel %vm1267, %v1399, 0.0
        %1464 = vadd.xlane.f32.xlu0 %v1463
        %v1465 = vpop.xlane.xlu0 %1464
        %v1466 = vsel %vm1267, %v1401, 0.0
        %1467 = vadd.xlane.f32.xlu0 %v1466
        %v1468 = vpop.xlane.xlu0 %1467
        %v1469 = vsel %vm1267, %v1403, 0.0
        %1470 = vadd.xlane.f32.xlu0 %v1469
        %v1471 = vpop.xlane.xlu0 %1470
        %v1472 = vsel %vm1267, %v1405, 0.0
        %1473 = vadd.xlane.f32.xlu0 %v1472
        %v1474 = vpop.xlane.xlu0 %1473
        %v1475 = vsel %vm1267, %v1407, 0.0
        %1476 = vadd.xlane.f32.xlu0 %v1475
        %v1477 = vpop.xlane.xlu0 %1476
        %v1478 = vsel %vm1267, %v1409, 0.0
        %1479 = vadd.xlane.f32.xlu0 %v1478
        %v1480 = vpop.xlane.xlu0 %1479
        %v1481 = vsel %vm1267, %v1411, 0.0
        %1482 = vadd.xlane.f32.xlu0 %v1481
        %v1483 = vpop.xlane.xlu0 %1482
        %v1484 = vsel %vm1267, %v1413, 0.0
        %1485 = vadd.xlane.f32.xlu0 %v1484
        %v1486 = vpop.xlane.xlu0 %1485
        %v1487 = vsel %vm1267, %v1415, 0.0
        %1488 = vadd.xlane.f32.xlu0 %v1487
        %v1489 = vpop.xlane.xlu0 %1488
        %v1490 = vsel %vm1267, %v1417, 0.0
        %1491 = vadd.xlane.f32.xlu0 %v1490
        %v1492 = vpop.xlane.xlu0 %1491
        %v1493 = vsel %vm1267, %v1419, 0.0
        %1494 = vadd.xlane.f32.xlu0 %v1493
        %v1495 = vpop.xlane.xlu0 %1494
        %v1496 = vsel %vm1267, %v1421, 0.0
        %1497 = vadd.xlane.f32.xlu0 %v1496
        %v1498 = vpop.xlane.xlu0 %1497
        %v1499 = vsel %vm1267, %v1423, 0.0
        %1500 = vadd.xlane.f32.xlu0 %v1499
        %v1501 = vpop.xlane.xlu0 %1500
        %v1502 = vsel %vm1267, %v1425, 0.0
        %1503 = vadd.xlane.f32.xlu0 %v1502
        %v1504 = vpop.xlane.xlu0 %1503
        %v1505 = vsel %vm1267, %v1427, 0.0
        %1506 = vadd.xlane.f32.xlu0 %v1505
        %v1507 = vpop.xlane.xlu0 %1506
        %v1508 = vsel %vm1267, %v1429, 0.0
        %1509 = vadd.xlane.f32.xlu0 %v1508
        %v1510 = vpop.xlane.xlu0 %1509
        %v1511 = vsel %vm1267, %v1431, 0.0
        %1512 = vadd.xlane.f32.xlu0 %v1511
        %v1513 = vpop.xlane.xlu0 %1512
        %v1514 = vsel %vm1267, %v1433, 0.0
        %1515 = vadd.xlane.f32.xlu0 %v1514
        %v1516 = vpop.xlane.xlu0 %1515
        %v1517 = vsel %vm1267, %v1435, 0.0
        %1518 = vadd.xlane.f32.xlu0 %v1517
        %v1519 = vpop.xlane.xlu0 %1518
        %v1520 = vsel %vm1267, %v1437, 0.0
        %1521 = vadd.xlane.f32.xlu0 %v1520
        %v1522 = vpop.xlane.xlu0 %1521
        %v1523 = vsel %vm1267, %v1439, 0.0
        %1524 = vadd.xlane.f32.xlu0 %v1523
        %v1525 = vpop.xlane.xlu0 %1524
        %v1526 = vsel %vm1267, %v1441, 0.0
        %1527 = vadd.xlane.f32.xlu0 %v1526
        %v1528 = vpop.xlane.xlu0 %1527
        %v1529 = vsel %vm1267, %v1443, 0.0
        %1530 = vadd.xlane.f32.xlu0 %v1529
        %v1531 = vpop.xlane.xlu0 %1530
        %v1532 = vsel %vm1267, %v1445, 0.0
        %1533 = vadd.xlane.f32.xlu0 %v1532
        %v1534 = vpop.xlane.xlu0 %1533
        %v1535 = vsel %vm1267, %v1447, 0.0
        %1536 = vadd.xlane.f32.xlu0 %v1535
        %v1537 = vpop.xlane.xlu0 %1536
        %v1538 = vsel %vm1267, %v1449, 0.0
        %1539 = vadd.xlane.f32.xlu0 %v1538
        %v1540 = vpop.xlane.xlu0 %1539
        %v1541 = vsel %vm1267, %v1451, 0.0
        %1542 = vadd.xlane.f32.xlu0 %v1541
        %v1543 = vpop.xlane.xlu0 %1542
        %v1544 = vsel %vm1267, %v1453, 0.0
        %1545 = vadd.xlane.f32.xlu0 %v1544
        %v1546 = vpop.xlane.xlu0 %1545
        %v1547 = vsel %vm1267, %v1455, 0.0
        %1548 = vadd.xlane.f32.xlu0 %v1547
        %v1549 = vpop.xlane.xlu0 %1548
        %v1550 = vsel %vm1267, %v1457, 0.0
        %1551 = vadd.xlane.f32.xlu0 %v1550
        %v1552 = vpop.xlane.xlu0 %1551
        %v1553 = vsel %vm1267, %v1459, 0.0
        %1554 = vadd.xlane.f32.xlu0 %v1553
        %v1555 = vpop.xlane.xlu0 %1554
        %v1556 = vrcp.pop %v1462
        %v1557 = vrcp.pop %v1465
        %v1558 = vrcp.pop %v1468
        %v1559 = vrcp.pop %v1471
        %v1560 = vrcp.pop %v1474
        %v1561 = vrcp.pop %v1477
        %v1562 = vrcp.pop %v1480
        %v1563 = vrcp.pop %v1483
        %v1564 = vrcp.pop %v1486
        %v1565 = vrcp.pop %v1489
        %v1566 = vrcp.pop %v1492
        %v1567 = vrcp.pop %v1495
        %v1568 = vrcp.pop %v1498
        %v1569 = vrcp.pop %v1501
        %v1570 = vrcp.pop %v1504
        %v1571 = vrcp.pop %v1507
        %v1572 = vrcp.pop %v1510
        %v1573 = vrcp.pop %v1513
        %v1574 = vrcp.pop %v1516
        %v1575 = vrcp.pop %v1519
        %v1576 = vrcp.pop %v1522
        %v1577 = vrcp.pop %v1525
        %v1578 = vrcp.pop %v1528
        %v1579 = vrcp.pop %v1531
        %v1580 = vrcp.pop %v1534
        %v1581 = vrcp.pop %v1537
        %v1582 = vrcp.pop %v1540
        %v1583 = vrcp.pop %v1543
        %v1584 = vrcp.pop %v1546
        %v1585 = vrcp.pop %v1549
        %v1586 = vrcp.pop %v1552
        %v1587 = vrcp.pop %v1555
        %v1588 = vmul.f32 %v1397, %v1556
        %v1589 = vmul.f32 %v1399, %v1557
        %v1590 = vmul.f32 %v1401, %v1558
        %v1591 = vmul.f32 %v1403, %v1559
        %v1592 = vmul.f32 %v1405, %v1560
        %v1593 = vmul.f32 %v1407, %v1561
        %v1594 = vmul.f32 %v1409, %v1562
        %v1595 = vmul.f32 %v1411, %v1563
        %v1596 = vmul.f32 %v1413, %v1564
        %v1597 = vmul.f32 %v1415, %v1565
        %v1598 = vmul.f32 %v1417, %v1566
        %v1599 = vmul.f32 %v1419, %v1567
        %v1600 = vmul.f32 %v1421, %v1568
        %v1601 = vmul.f32 %v1423, %v1569
        %v1602 = vmul.f32 %v1425, %v1570
        %v1603 = vmul.f32 %v1427, %v1571
        %v1604 = vmul.f32 %v1429, %v1572
        %v1605 = vmul.f32 %v1431, %v1573
        %v1606 = vmul.f32 %v1433, %v1574
        %v1607 = vmul.f32 %v1435, %v1575
        %v1608 = vmul.f32 %v1437, %v1576
        %v1609 = vmul.f32 %v1439, %v1577
        %v1610 = vmul.f32 %v1441, %v1578
        %v1611 = vmul.f32 %v1443, %v1579
        %v1612 = vmul.f32 %v1445, %v1580
        %v1613 = vmul.f32 %v1447, %v1581
        %v1614 = vmul.f32 %v1449, %v1582
        %v1615 = vmul.f32 %v1451, %v1583
        %v1616 = vmul.f32 %v1453, %v1584
        %v1617 = vmul.f32 %v1455, %v1585
        %v1618 = vmul.f32 %v1457, %v1586
        %v1619 = vmul.f32 %v1459, %v1587
        %v1620 = vpack.c.bf16 %v1588, %v1588
        %v1621 = vpack.c.bf16 %v1589, %v1589
        %v1622 = vpack.c.bf16 %v1590, %v1590
        %v1623 = vpack.c.bf16 %v1591, %v1591
        %v1624 = vpack.c.bf16 %v1592, %v1592
        %v1625 = vpack.c.bf16 %v1593, %v1593
        %v1626 = vpack.c.bf16 %v1594, %v1594
        %v1627 = vpack.c.bf16 %v1595, %v1595
        %v1628 = vpack.c.bf16 %v1596, %v1596
        %v1629 = vpack.c.bf16 %v1597, %v1597
        %v1630 = vpack.c.bf16 %v1598, %v1598
        %v1631 = vpack.c.bf16 %v1599, %v1599
        %v1632 = vpack.c.bf16 %v1600, %v1600
        %v1633 = vpack.c.bf16 %v1601, %v1601
        %v1634 = vpack.c.bf16 %v1602, %v1602
        %v1635 = vpack.c.bf16 %v1603, %v1603
        %v1636 = vpack.c.bf16 %v1604, %v1604
        %v1637 = vpack.c.bf16 %v1605, %v1605
        %v1638 = vpack.c.bf16 %v1606, %v1606
        %v1639 = vpack.c.bf16 %v1607, %v1607
        %v1640 = vpack.c.bf16 %v1608, %v1608
        %v1641 = vpack.c.bf16 %v1609, %v1609
        %v1642 = vpack.c.bf16 %v1610, %v1610
        %v1643 = vpack.c.bf16 %v1611, %v1611
        %v1644 = vpack.c.bf16 %v1612, %v1612
        %v1645 = vpack.c.bf16 %v1613, %v1613
        %v1646 = vpack.c.bf16 %v1614, %v1614
        %v1647 = vpack.c.bf16 %v1615, %v1615
        %v1648 = vpack.c.bf16 %v1616, %v1616
        %v1649 = vpack.c.bf16 %v1617, %v1617
        %v1650 = vpack.c.bf16 %v1618, %v1618
        %v1651 = vpack.c.bf16 %v1619, %v1619
        %v1660 = vunpack.c.l.b16 %v1620
        %v1661 = vunpack.c.l.b16 %v1621
        %v1662 = vunpack.c.l.b16 %v1622
        %v1663 = vunpack.c.l.b16 %v1623
        %v1664 = vunpack.c.l.b16 %v1624
        %v1665 = vunpack.c.l.b16 %v1625
        %v1666 = vunpack.c.l.b16 %v1626
        %v1667 = vunpack.c.l.b16 %v1627
        %v1668 = vpack.c.b16 %v1661, %v1660
        %v1669 = vpack.c.b16 %v1663, %v1662
        %v1670 = vpack.c.b16 %v1665, %v1664
        %v1671 = vpack.c.b16 %v1667, %v1666
        %1672 = vrot.lane.b32.xlu0 %v1025, 64
        %v1673 = vpop.permute.xlu0 %1672
        %1674 = vrot.lane.b32.xlu0 %v1026, 64
        %v1675 = vpop.permute.xlu0 %1674
        %1676 = vrot.lane.b32.xlu0 %v1027, 64
        %v1677 = vpop.permute.xlu0 %1676
        %1678 = vrot.lane.b32.xlu0 %v1028, 64
        %v1679 = vpop.permute.xlu0 %1678
        %v1685 = vsel %vm1267, %v1668, 0
        %v1688 = vsel %vm1267, %v1669, 0
        %v1691 = vsel %vm1267, %v1670, 0
        %v1694 = vsel %vm1267, %v1671, 0
        %1696 = vmatpush.bf16.msra.mxu0 0
        %1697 = vmatpush.bf16.msra.mxu0 0
        %1698 = vmatpush.bf16.msra.mxu0 0
        %1699 = vmatpush.bf16.msra.mxu0 0
        %1700 = vmatpush.bf16.msra.mxu0 %v1679
        %1701 = vmatpush.bf16.msra.mxu0 %v1677
        %1702 = vmatpush.bf16.msra.mxu0 %v1675
        %1703 = vmatpush.bf16.msra.mxu0 %v1673
        %1704 = vmatmul.bf16.gmra.mxu0 %v1685
        %v1705 = vpop.f32.mrf.mxu0
        %v1706 = vadd.f32 0.0, %v1705
        %v1707 = vpop.f32.mrf.mxu0
        %v1708 = vadd.f32 0.0, %v1707
        %1709 = vmatmul.bf16.gmra.mxu0 %v1688
        %v1710 = vpop.f32.mrf.mxu0
        %v1711 = vadd.f32 0.0, %v1710
        %v1712 = vpop.f32.mrf.mxu0
        %v1713 = vadd.f32 0.0, %v1712
        %1714 = vmatmul.bf16.gmra.mxu0 %v1691
        %v1715 = vpop.f32.mrf.mxu0
        %v1716 = vadd.f32 0.0, %v1715
        %v1717 = vpop.f32.mrf.mxu0
        %v1718 = vadd.f32 0.0, %v1717
        %1719 = vmatmul.bf16.gmra.mxu0 %v1694
        %v1720 = vpop.f32.mrf.mxu0
        %v1721 = vadd.f32 0.0, %v1720
        %v1722 = vpop.f32.mrf.mxu0
        %v1723 = vadd.f32 0.0, %v1722
        %1724 = vdwg.mxu0
        %v1733 = vunpack.c.l.b16 %v1628
        %v1734 = vunpack.c.l.b16 %v1629
        %v1735 = vunpack.c.l.b16 %v1630
        %v1736 = vunpack.c.l.b16 %v1631
        %v1737 = vunpack.c.l.b16 %v1632
        %v1738 = vunpack.c.l.b16 %v1633
        %v1739 = vunpack.c.l.b16 %v1634
        %v1740 = vunpack.c.l.b16 %v1635
        %v1741 = vpack.c.b16 %v1734, %v1733
        %v1742 = vpack.c.b16 %v1736, %v1735
        %v1743 = vpack.c.b16 %v1738, %v1737
        %v1744 = vpack.c.b16 %v1740, %v1739
        %1745 = vrot.lane.b32.xlu0 %v1091, 64
        %v1746 = vpop.permute.xlu0 %1745
        %1747 = vrot.lane.b32.xlu0 %v1092, 64
        %v1748 = vpop.permute.xlu0 %1747
        %1749 = vrot.lane.b32.xlu0 %v1093, 64
        %v1750 = vpop.permute.xlu0 %1749
        %1751 = vrot.lane.b32.xlu0 %v1094, 64
        %v1752 = vpop.permute.xlu0 %1751
        %v1758 = vsel %vm1267, %v1741, 0
        %v1761 = vsel %vm1267, %v1742, 0
        %v1764 = vsel %vm1267, %v1743, 0
        %v1767 = vsel %vm1267, %v1744, 0
        %1769 = vmatpush.bf16.msra.mxu0 0
        %1770 = vmatpush.bf16.msra.mxu0 0
        %1771 = vmatpush.bf16.msra.mxu0 0
        %1772 = vmatpush.bf16.msra.mxu0 0
        %1773 = vmatpush.bf16.msra.mxu0 %v1752
        %1774 = vmatpush.bf16.msra.mxu0 %v1750
        %1775 = vmatpush.bf16.msra.mxu0 %v1748
        %1776 = vmatpush.bf16.msra.mxu0 %v1746
        %1777 = vmatmul.bf16.gmra.mxu0 %v1758
        %v1778 = vpop.f32.mrf.mxu0
        %v1779 = vadd.f32 0.0, %v1778
        %v1780 = vpop.f32.mrf.mxu0
        %v1781 = vadd.f32 0.0, %v1780
        %1782 = vmatmul.bf16.gmra.mxu0 %v1761
        %v1783 = vpop.f32.mrf.mxu0
        %v1784 = vadd.f32 0.0, %v1783
        %v1785 = vpop.f32.mrf.mxu0
        %v1786 = vadd.f32 0.0, %v1785
        %1787 = vmatmul.bf16.gmra.mxu0 %v1764
        %v1788 = vpop.f32.mrf.mxu0
        %v1789 = vadd.f32 0.0, %v1788
        %v1790 = vpop.f32.mrf.mxu0
        %v1791 = vadd.f32 0.0, %v1790
        %1792 = vmatmul.bf16.gmra.mxu0 %v1767
        %v1793 = vpop.f32.mrf.mxu0
        %v1794 = vadd.f32 0.0, %v1793
        %v1795 = vpop.f32.mrf.mxu0
        %v1796 = vadd.f32 0.0, %v1795
        %1797 = vdwg.mxu0
        %v1806 = vunpack.c.l.b16 %v1636
        %v1807 = vunpack.c.l.b16 %v1637
        %v1808 = vunpack.c.l.b16 %v1638
        %v1809 = vunpack.c.l.b16 %v1639
        %v1810 = vunpack.c.l.b16 %v1640
        %v1811 = vunpack.c.l.b16 %v1641
        %v1812 = vunpack.c.l.b16 %v1642
        %v1813 = vunpack.c.l.b16 %v1643
        %v1814 = vpack.c.b16 %v1807, %v1806
        %v1815 = vpack.c.b16 %v1809, %v1808
        %v1816 = vpack.c.b16 %v1811, %v1810
        %v1817 = vpack.c.b16 %v1813, %v1812
        %1818 = vrot.lane.b32.xlu0 %v1155, 64
        %v1819 = vpop.permute.xlu0 %1818
        %1820 = vrot.lane.b32.xlu0 %v1156, 64
        %v1821 = vpop.permute.xlu0 %1820
        %1822 = vrot.lane.b32.xlu0 %v1157, 64
        %v1823 = vpop.permute.xlu0 %1822
        %1824 = vrot.lane.b32.xlu0 %v1158, 64
        %v1825 = vpop.permute.xlu0 %1824
        %v1831 = vsel %vm1267, %v1814, 0
        %v1834 = vsel %vm1267, %v1815, 0
        %v1837 = vsel %vm1267, %v1816, 0
        %v1840 = vsel %vm1267, %v1817, 0
        %1842 = vmatpush.bf16.msra.mxu0 0
        %1843 = vmatpush.bf16.msra.mxu0 0
        %1844 = vmatpush.bf16.msra.mxu0 0
        %1845 = vmatpush.bf16.msra.mxu0 0
        %1846 = vmatpush.bf16.msra.mxu0 %v1825
        %1847 = vmatpush.bf16.msra.mxu0 %v1823
        %1848 = vmatpush.bf16.msra.mxu0 %v1821
        %1849 = vmatpush.bf16.msra.mxu0 %v1819
        %1850 = vmatmul.bf16.gmra.mxu0 %v1831
        %v1851 = vpop.f32.mrf.mxu0
        %v1852 = vadd.f32 0.0, %v1851
        %v1853 = vpop.f32.mrf.mxu0
        %v1854 = vadd.f32 0.0, %v1853
        %1855 = vmatmul.bf16.gmra.mxu0 %v1834
        %v1856 = vpop.f32.mrf.mxu0
        %v1857 = vadd.f32 0.0, %v1856
        %v1858 = vpop.f32.mrf.mxu0
        %v1859 = vadd.f32 0.0, %v1858
        %1860 = vmatmul.bf16.gmra.mxu0 %v1837
        %v1861 = vpop.f32.mrf.mxu0
        %v1862 = vadd.f32 0.0, %v1861
        %v1863 = vpop.f32.mrf.mxu0
        %v1864 = vadd.f32 0.0, %v1863
        %1865 = vmatmul.bf16.gmra.mxu0 %v1840
        %v1866 = vpop.f32.mrf.mxu0
        %v1867 = vadd.f32 0.0, %v1866
        %v1868 = vpop.f32.mrf.mxu0
        %v1869 = vadd.f32 0.0, %v1868
        %1870 = vdwg.mxu0
        %v1879 = vunpack.c.l.b16 %v1644
        %v1880 = vunpack.c.l.b16 %v1645
        %v1881 = vunpack.c.l.b16 %v1646
        %v1882 = vunpack.c.l.b16 %v1647
        %v1883 = vunpack.c.l.b16 %v1648
        %v1884 = vunpack.c.l.b16 %v1649
        %v1885 = vunpack.c.l.b16 %v1650
        %v1886 = vunpack.c.l.b16 %v1651
        %v1887 = vpack.c.b16 %v1880, %v1879
        %v1888 = vpack.c.b16 %v1882, %v1881
        %v1889 = vpack.c.b16 %v1884, %v1883
        %v1890 = vpack.c.b16 %v1886, %v1885
        %1891 = vrot.lane.b32.xlu0 %v1219, 64
        %v1892 = vpop.permute.xlu0 %1891
        %1893 = vrot.lane.b32.xlu0 %v1220, 64
        %v1894 = vpop.permute.xlu0 %1893
        %1895 = vrot.lane.b32.xlu0 %v1221, 64
        %v1896 = vpop.permute.xlu0 %1895
        %1897 = vrot.lane.b32.xlu0 %v1222, 64
        %v1898 = vpop.permute.xlu0 %1897
        %v1904 = vsel %vm1267, %v1887, 0
        %v1907 = vsel %vm1267, %v1888, 0
        %v1910 = vsel %vm1267, %v1889, 0
        %v1913 = vsel %vm1267, %v1890, 0
        %1915 = vmatpush.bf16.msra.mxu0 0
        %1916 = vmatpush.bf16.msra.mxu0 0
        %1917 = vmatpush.bf16.msra.mxu0 0
        %1918 = vmatpush.bf16.msra.mxu0 0
        %1919 = vmatpush.bf16.msra.mxu0 %v1898
        %1920 = vmatpush.bf16.msra.mxu0 %v1896
        %1921 = vmatpush.bf16.msra.mxu0 %v1894
        %1922 = vmatpush.bf16.msra.mxu0 %v1892
        %1923 = vmatmul.bf16.gmra.mxu0 %v1904
        %v1924 = vpop.f32.mrf.mxu0
        %v1925 = vadd.f32 0.0, %v1924
        %v1926 = vpop.f32.mrf.mxu0
        %v1927 = vadd.f32 0.0, %v1926
        %1928 = vmatmul.bf16.gmra.mxu0 %v1907
        %v1929 = vpop.f32.mrf.mxu0
        %v1930 = vadd.f32 0.0, %v1929
        %v1931 = vpop.f32.mrf.mxu0
        %v1932 = vadd.f32 0.0, %v1931
        %1933 = vmatmul.bf16.gmra.mxu0 %v1910
        %v1934 = vpop.f32.mrf.mxu0
        %v1935 = vadd.f32 0.0, %v1934
        %v1936 = vpop.f32.mrf.mxu0
        %v1937 = vadd.f32 0.0, %v1936
        %1938 = vmatmul.bf16.gmra.mxu0 %v1913
        %v1939 = vpop.f32.mrf.mxu0
        %v1940 = vadd.f32 0.0, %v1939
        %v1941 = vpop.f32.mrf.mxu0
        %v1942 = vadd.f32 0.0, %v1941
        %1943 = vdwg.mxu0
        %1952 = vrot.lane.b32.xlu0 %v1779, 8
        %v1953 = vpop.permute.xlu0 %1952
        %1954 = vrot.lane.b32.xlu0 %v1781, 8
        %v1955 = vpop.permute.xlu0 %1954
        %1956 = vrot.lane.b32.xlu0 %v1784, 8
        %v1957 = vpop.permute.xlu0 %1956
        %1958 = vrot.lane.b32.xlu0 %v1786, 8
        %v1959 = vpop.permute.xlu0 %1958
        %1960 = vrot.lane.b32.xlu0 %v1789, 8
        %v1961 = vpop.permute.xlu0 %1960
        %1962 = vrot.lane.b32.xlu0 %v1791, 8
        %v1963 = vpop.permute.xlu0 %1962
        %1964 = vrot.lane.b32.xlu0 %v1794, 8
        %v1965 = vpop.permute.xlu0 %1964
        %1966 = vrot.lane.b32.xlu0 %v1796, 8
        %v1967 = vpop.permute.xlu0 %1966
        %1984 = vrot.lane.b32.xlu0 %v1852, 16
        %v1985 = vpop.permute.xlu0 %1984
        %1986 = vrot.lane.b32.xlu0 %v1854, 16
        %v1987 = vpop.permute.xlu0 %1986
        %1988 = vrot.lane.b32.xlu0 %v1857, 16
        %v1989 = vpop.permute.xlu0 %1988
        %1990 = vrot.lane.b32.xlu0 %v1859, 16
        %v1991 = vpop.permute.xlu0 %1990
        %1992 = vrot.lane.b32.xlu0 %v1862, 16
        %v1993 = vpop.permute.xlu0 %1992
        %1994 = vrot.lane.b32.xlu0 %v1864, 16
        %v1995 = vpop.permute.xlu0 %1994
        %1996 = vrot.lane.b32.xlu0 %v1867, 16
        %v1997 = vpop.permute.xlu0 %1996
        %1998 = vrot.lane.b32.xlu0 %v1869, 16
        %v1999 = vpop.permute.xlu0 %1998
        %2016 = vrot.lane.b32.xlu0 %v1925, 24
        %v2017 = vpop.permute.xlu0 %2016
        %2018 = vrot.lane.b32.xlu0 %v1927, 24
        %v2019 = vpop.permute.xlu0 %2018
        %2020 = vrot.lane.b32.xlu0 %v1930, 24
        %v2021 = vpop.permute.xlu0 %2020
        %2022 = vrot.lane.b32.xlu0 %v1932, 24
        %v2023 = vpop.permute.xlu0 %2022
        %2024 = vrot.lane.b32.xlu0 %v1935, 24
        %v2025 = vpop.permute.xlu0 %2024
        %2026 = vrot.lane.b32.xlu0 %v1937, 24
        %v2027 = vpop.permute.xlu0 %2026
        %2028 = vrot.lane.b32.xlu0 %v1940, 24
        %v2029 = vpop.permute.xlu0 %2028
        %2030 = vrot.lane.b32.xlu0 %v1942, 24
        %v2031 = vpop.permute.xlu0 %2030
        %v2040 = vsel %vm1029, %v1706, %v1953
        %v2041 = vsel %vm1029, %v1708, %v1955
        %v2042 = vsel %vm1029, %v1711, %v1957
        %v2043 = vsel %vm1029, %v1713, %v1959
        %v2044 = vsel %vm1029, %v1716, %v1961
        %v2045 = vsel %vm1029, %v1718, %v1963
        %v2046 = vsel %vm1029, %v1721, %v1965
        %v2047 = vsel %vm1029, %v1723, %v1967
        %vm2048 = vcmask 130048
        %v2049 = vsel %vm2048, %v2040, %v1985
        %v2050 = vsel %vm2048, %v2041, %v1987
        %v2051 = vsel %vm2048, %v2042, %v1989
        %v2052 = vsel %vm2048, %v2043, %v1991
        %v2053 = vsel %vm2048, %v2044, %v1993
        %v2054 = vsel %vm2048, %v2045, %v1995
        %v2055 = vsel %vm2048, %v2046, %v1997
        %v2056 = vsel %vm2048, %v2047, %v1999
        %vm2057 = vcmask 195584
        %v2058 = vsel %vm2057, %v2049, %v2017
        %v2059 = vsel %vm2057, %v2050, %v2019
        %v2060 = vsel %vm2057, %v2051, %v2021
        %v2061 = vsel %vm2057, %v2052, %v2023
        %v2062 = vsel %vm2057, %v2053, %v2025
        %v2063 = vsel %vm2057, %v2054, %v2027
        %v2064 = vsel %vm2057, %v2055, %v2029
        %v2065 = vsel %vm2057, %v2056, %v2031
        %v2066 = vpack.c.bf16 %v2059, %v2058
        %v2067 = vpack.c.bf16 %v2061, %v2060
        %v2068 = vpack.c.bf16 %v2063, %v2062
        %v2069 = vpack.c.bf16 %v2065, %v2064
        %v2070 = vld [vmem:[#allocation7] sm:$0xf]
        %v2071 = vld [vmem:[#allocation7 + $0x4] sm:$0xf]
        %v2072 = vld [vmem:[#allocation7 + $0x8] sm:$0xf]
        %v2073 = vld [vmem:[#allocation7 + $0xc] sm:$0xf]
        %v2074 = vld [vmem:[%s4] sm:$0x1]
        %v2076 = vperm.slane %v2074, 0
        %v2082 = vunpack.c.l.b16 %v2070
        %v2083 = vunpack.c.l.b16 %v2071
        %v2084 = vunpack.c.l.b16 %v2072
        %v2085 = vunpack.c.l.b16 %v2073
        %v2086 = vpack.c.b16 %v2083, %v2082
        %v2087 = vpack.c.b16 %v2085, %v2084
        %v2091 = vsel %vm566, %v2066, 0
        %v2094 = vsel %vm566, %v2067, 0
        %v2097 = vsel %vm566, %v2068, 0
        %v2100 = vsel %vm566, %v2069, 0
        %2102 = vmatpush.bf16.msra.mxu0 0
        %2103 = vmatpush.bf16.msra.mxu0 0
        %2104 = vmatpush.bf16.msra.mxu0 0
        %2105 = vmatpush.bf16.msra.mxu0 0
        %2106 = vmatpush.bf16.msra.mxu0 0
        %2107 = vmatpush.bf16.msra.mxu0 0
        %2108 = vmatpush.bf16.msra.mxu0 %v2087
        %2109 = vmatpush.bf16.msra.mxu0 %v2086
        %2110 = vmatmul.bf16.gmra.mxu0 %v2091
        %v2111 = vpop.f32.mrf.mxu0
        %v2112 = vadd.f32 %v2076, %v2111
        %v2113 = vpop.f32.mrf.mxu0
        %v2114 = vadd.f32 %v2076, %v2113
        %2115 = vmatmul.bf16.gmra.mxu0 %v2094
        %v2116 = vpop.f32.mrf.mxu0
        %v2117 = vadd.f32 %v2076, %v2116
        %v2118 = vpop.f32.mrf.mxu0
        %v2119 = vadd.f32 %v2076, %v2118
        %2120 = vmatmul.bf16.gmra.mxu0 %v2097
        %v2121 = vpop.f32.mrf.mxu0
        %v2122 = vadd.f32 %v2076, %v2121
        %v2123 = vpop.f32.mrf.mxu0
        %v2124 = vadd.f32 %v2076, %v2123
        %2125 = vmatmul.bf16.gmra.mxu0 %v2100
        %v2126 = vpop.f32.mrf.mxu0
        %v2127 = vadd.f32 %v2076, %v2126
        %v2128 = vpop.f32.mrf.mxu0
        %v2129 = vadd.f32 %v2076, %v2128
        %2130 = vdwg.mxu0
        %v2131 = vadd.f32 %v2112, %v548
        %v2132 = vadd.f32 %v2114, %v549
        %v2133 = vadd.f32 %v2117, %v550
        %v2134 = vadd.f32 %v2119, %v551
        %v2135 = vadd.f32 %v2122, %v552
        %v2136 = vadd.f32 %v2124, %v553
        %v2137 = vadd.f32 %v2127, %v554
        %v2138 = vadd.f32 %v2129, %v555
        %v2139 = vld [vmem:[%s7] sm:$0x1]
        %v2140 = vld [vmem:[%s8] sm:$0x1]
        %v2141 = vsel %vm566, %v2131, 0.0
        %2142 = vadd.xlane.f32.xlu0 %v2141
        %v2143 = vpop.xlane.xlu0 %2142
        %v2144 = vsel %vm566, %v2132, 0.0
        %2145 = vadd.xlane.f32.xlu0 %v2144
        %v2146 = vpop.xlane.xlu0 %2145
        %v2147 = vsel %vm566, %v2133, 0.0
        %2148 = vadd.xlane.f32.xlu0 %v2147
        %v2149 = vpop.xlane.xlu0 %2148
        %v2150 = vsel %vm566, %v2134, 0.0
        %2151 = vadd.xlane.f32.xlu0 %v2150
        %v2152 = vpop.xlane.xlu0 %2151
        %v2153 = vsel %vm566, %v2135, 0.0
        %2154 = vadd.xlane.f32.xlu0 %v2153
        %v2155 = vpop.xlane.xlu0 %2154
        %v2156 = vsel %vm566, %v2136, 0.0
        %2157 = vadd.xlane.f32.xlu0 %v2156
        %v2158 = vpop.xlane.xlu0 %2157
        %v2159 = vsel %vm566, %v2137, 0.0
        %2160 = vadd.xlane.f32.xlu0 %v2159
        %v2161 = vpop.xlane.xlu0 %2160
        %v2162 = vsel %vm566, %v2138, 0.0
        %2163 = vadd.xlane.f32.xlu0 %v2162
        %v2164 = vpop.xlane.xlu0 %2163
        %v2165 = vmul.f32 %v2143, %v597
        %v2166 = vmul.f32 %v2146, %v597
        %v2167 = vmul.f32 %v2149, %v597
        %v2168 = vmul.f32 %v2152, %v597
        %v2169 = vmul.f32 %v2155, %v597
        %v2170 = vmul.f32 %v2158, %v597
        %v2171 = vmul.f32 %v2161, %v597
        %v2172 = vmul.f32 %v2164, %v597
        %v2173 = vsub.f32 %v2131, %v2165
        %v2174 = vsub.f32 %v2132, %v2166
        %v2175 = vsub.f32 %v2133, %v2167
        %v2176 = vsub.f32 %v2134, %v2168
        %v2177 = vsub.f32 %v2135, %v2169
        %v2178 = vsub.f32 %v2136, %v2170
        %v2179 = vsub.f32 %v2137, %v2171
        %v2180 = vsub.f32 %v2138, %v2172
        %v2181 = vmul.f32 %v2173, %v2173
        %v2182 = vmul.f32 %v2174, %v2174
        %v2183 = vmul.f32 %v2175, %v2175
        %v2184 = vmul.f32 %v2176, %v2176
        %v2185 = vmul.f32 %v2177, %v2177
        %v2186 = vmul.f32 %v2178, %v2178
        %v2187 = vmul.f32 %v2179, %v2179
        %v2188 = vmul.f32 %v2180, %v2180
        %v2189 = vsel %vm566, %v2181, 0.0
        %2190 = vadd.xlane.f32.xlu0 %v2189
        %v2191 = vpop.xlane.xlu0 %2190
        %v2192 = vsel %vm566, %v2182, 0.0
        %2193 = vadd.xlane.f32.xlu0 %v2192
        %v2194 = vpop.xlane.xlu0 %2193
        %v2195 = vsel %vm566, %v2183, 0.0
        %2196 = vadd.xlane.f32.xlu0 %v2195
        %v2197 = vpop.xlane.xlu0 %2196
        %v2198 = vsel %vm566, %v2184, 0.0
        %2199 = vadd.xlane.f32.xlu0 %v2198
        %v2200 = vpop.xlane.xlu0 %2199
        %v2201 = vsel %vm566, %v2185, 0.0
        %2202 = vadd.xlane.f32.xlu0 %v2201
        %v2203 = vpop.xlane.xlu0 %2202
        %v2204 = vsel %vm566, %v2186, 0.0
        %2205 = vadd.xlane.f32.xlu0 %v2204
        %v2206 = vpop.xlane.xlu0 %2205
        %v2207 = vsel %vm566, %v2187, 0.0
        %2208 = vadd.xlane.f32.xlu0 %v2207
        %v2209 = vpop.xlane.xlu0 %2208
        %v2210 = vsel %vm566, %v2188, 0.0
        %2211 = vadd.xlane.f32.xlu0 %v2210
        %v2212 = vpop.xlane.xlu0 %2211
        %v2213 = vmul.f32 %v2191, %v597
        %v2214 = vmul.f32 %v2194, %v597
        %v2215 = vmul.f32 %v2197, %v597
        %v2216 = vmul.f32 %v2200, %v597
        %v2217 = vmul.f32 %v2203, %v597
        %v2218 = vmul.f32 %v2206, %v597
        %v2219 = vmul.f32 %v2209, %v597
        %v2220 = vmul.f32 %v2212, %v597
        %v2221 = vadd.f32 %v2213, 1e-05
        %v2222 = vadd.f32 %v2214, 1e-05
        %v2223 = vadd.f32 %v2215, 1e-05
        %v2224 = vadd.f32 %v2216, 1e-05
        %v2225 = vadd.f32 %v2217, 1e-05
        %v2226 = vadd.f32 %v2218, 1e-05
        %v2227 = vadd.f32 %v2219, 1e-05
        %v2228 = vadd.f32 %v2220, 1e-05
        %v2229 = vrsqrt.pop %v2221
        %v2230 = vmul.f32 %v2229, %v2221
        %v2231 = vmul.f32 %v2230, %v2229
        %v2232 = vmul.f32 0.5, %v2231
        %v2233 = vsub.f32 1.5, %v2232
        %v2234 = vmul.f32 %v2229, %v2233
        %vm2235 = vweird.f32 %v2221
        %vm2236 = vweird.f32 %v2229
        %vm2237 = vmor %vm2235, %vm2236
        %v2238 = vsel %vm2237, %v2229, %v2234
        %v2239 = vrsqrt.pop %v2222
        %v2240 = vmul.f32 %v2239, %v2222
        %v2241 = vmul.f32 %v2240, %v2239
        %v2242 = vmul.f32 0.5, %v2241
        %v2243 = vsub.f32 1.5, %v2242
        %v2244 = vmul.f32 %v2239, %v2243
        %vm2245 = vweird.f32 %v2222
        %vm2246 = vweird.f32 %v2239
        %vm2247 = vmor %vm2245, %vm2246
        %v2248 = vsel %vm2247, %v2239, %v2244
        %v2249 = vrsqrt.pop %v2223
        %v2250 = vmul.f32 %v2249, %v2223
        %v2251 = vmul.f32 %v2250, %v2249
        %v2252 = vmul.f32 0.5, %v2251
        %v2253 = vsub.f32 1.5, %v2252
        %v2254 = vmul.f32 %v2249, %v2253
        %vm2255 = vweird.f32 %v2223
        %vm2256 = vweird.f32 %v2249
        %vm2257 = vmor %vm2255, %vm2256
        %v2258 = vsel %vm2257, %v2249, %v2254
        %v2259 = vrsqrt.pop %v2224
        %v2260 = vmul.f32 %v2259, %v2224
        %v2261 = vmul.f32 %v2260, %v2259
        %v2262 = vmul.f32 0.5, %v2261
        %v2263 = vsub.f32 1.5, %v2262
        %v2264 = vmul.f32 %v2259, %v2263
        %vm2265 = vweird.f32 %v2224
        %vm2266 = vweird.f32 %v2259
        %vm2267 = vmor %vm2265, %vm2266
        %v2268 = vsel %vm2267, %v2259, %v2264
        %v2269 = vrsqrt.pop %v2225
        %v2270 = vmul.f32 %v2269, %v2225
        %v2271 = vmul.f32 %v2270, %v2269
        %v2272 = vmul.f32 0.5, %v2271
        %v2273 = vsub.f32 1.5, %v2272
        %v2274 = vmul.f32 %v2269, %v2273
        %vm2275 = vweird.f32 %v2225
        %vm2276 = vweird.f32 %v2269
        %vm2277 = vmor %vm2275, %vm2276
        %v2278 = vsel %vm2277, %v2269, %v2274
        %v2279 = vrsqrt.pop %v2226
        %v2280 = vmul.f32 %v2279, %v2226
        %v2281 = vmul.f32 %v2280, %v2279
        %v2282 = vmul.f32 0.5, %v2281
        %v2283 = vsub.f32 1.5, %v2282
        %v2284 = vmul.f32 %v2279, %v2283
        %vm2285 = vweird.f32 %v2226
        %vm2286 = vweird.f32 %v2279
        %vm2287 = vmor %vm2285, %vm2286
        %v2288 = vsel %vm2287, %v2279, %v2284
        %v2289 = vrsqrt.pop %v2227
        %v2290 = vmul.f32 %v2289, %v2227
        %v2291 = vmul.f32 %v2290, %v2289
        %v2292 = vmul.f32 0.5, %v2291
        %v2293 = vsub.f32 1.5, %v2292
        %v2294 = vmul.f32 %v2289, %v2293
        %vm2295 = vweird.f32 %v2227
        %vm2296 = vweird.f32 %v2289
        %vm2297 = vmor %vm2295, %vm2296
        %v2298 = vsel %vm2297, %v2289, %v2294
        %v2299 = vrsqrt.pop %v2228
        %v2300 = vmul.f32 %v2299, %v2228
        %v2301 = vmul.f32 %v2300, %v2299
        %v2302 = vmul.f32 0.5, %v2301
        %v2303 = vsub.f32 1.5, %v2302
        %v2304 = vmul.f32 %v2299, %v2303
        %vm2305 = vweird.f32 %v2228
        %vm2306 = vweird.f32 %v2299
        %vm2307 = vmor %vm2305, %vm2306
        %v2308 = vsel %vm2307, %v2299, %v2304
        %v2309 = vmul.f32 %v2173, %v2238
        %v2310 = vmul.f32 %v2174, %v2248
        %v2311 = vmul.f32 %v2175, %v2258
        %v2312 = vmul.f32 %v2176, %v2268
        %v2313 = vmul.f32 %v2177, %v2278
        %v2314 = vmul.f32 %v2178, %v2288
        %v2315 = vmul.f32 %v2179, %v2298
        %v2316 = vmul.f32 %v2180, %v2308
        %v2318 = vperm.slane %v2139, 0
        %v2320 = vmul.f32 %v2309, %v2318
        %v2321 = vmul.f32 %v2310, %v2318
        %v2322 = vmul.f32 %v2311, %v2318
        %v2323 = vmul.f32 %v2312, %v2318
        %v2324 = vmul.f32 %v2313, %v2318
        %v2325 = vmul.f32 %v2314, %v2318
        %v2326 = vmul.f32 %v2315, %v2318
        %v2327 = vmul.f32 %v2316, %v2318
        %v2329 = vperm.slane %v2140, 0
        %v2331 = vadd.f32 %v2320, %v2329
        %v2332 = vadd.f32 %v2321, %v2329
        %v2333 = vadd.f32 %v2322, %v2329
        %v2334 = vadd.f32 %v2323, %v2329
        %v2335 = vadd.f32 %v2324, %v2329
        %v2336 = vadd.f32 %v2325, %v2329
        %v2337 = vadd.f32 %v2326, %v2329
        %v2338 = vadd.f32 %v2327, %v2329
        %v2339 = vpack.c.bf16 %v2332, %v2331
        %v2340 = vpack.c.bf16 %v2334, %v2333
        %v2341 = vpack.c.bf16 %v2336, %v2335
        %v2342 = vpack.c.bf16 %v2338, %v2337
        %v2343 = vld [vmem:[#allocation8] sm:$0xf]
        %v2344 = vld [vmem:[#allocation8 + $0x4] sm:$0xf]
        %v2345 = vld [vmem:[#allocation8 + $0x8] sm:$0xf]
        %v2346 = vld [vmem:[#allocation8 + $0xc] sm:$0xf]
        %v2347 = vld [vmem:[%s10] sm:$0x1]
        %v2349 = vperm.slane %v2347, 0
        %v2355 = vunpack.c.l.b16 %v2343
        %v2356 = vunpack.c.l.b16 %v2344
        %v2357 = vunpack.c.l.b16 %v2345
        %v2358 = vunpack.c.l.b16 %v2346
        %v2359 = vpack.c.b16 %v2356, %v2355
        %v2360 = vpack.c.b16 %v2358, %v2357
        %v2364 = vsel %vm566, %v2339, 0
        %v2367 = vsel %vm566, %v2340, 0
        %v2370 = vsel %vm566, %v2341, 0
        %v2373 = vsel %vm566, %v2342, 0
        %2375 = vmatpush.bf16.msra.mxu0 0
        %2376 = vmatpush.bf16.msra.mxu0 0
        %2377 = vmatpush.bf16.msra.mxu0 0
        %2378 = vmatpush.bf16.msra.mxu0 0
        %2379 = vmatpush.bf16.msra.mxu0 0
        %2380 = vmatpush.bf16.msra.mxu0 0
        %2381 = vmatpush.bf16.msra.mxu0 %v2360
        %2382 = vmatpush.bf16.msra.mxu0 %v2359
        %2383 = vmatmul.bf16.gmra.mxu0 %v2364
        %v2384 = vpop.f32.mrf.mxu0
        %v2385 = vadd.f32 %v2349, %v2384
        %v2386 = vpop.f32.mrf.mxu0
        %v2387 = vadd.f32 %v2349, %v2386
        %2388 = vmatmul.bf16.gmra.mxu0 %v2367
        %v2389 = vpop.f32.mrf.mxu0
        %v2390 = vadd.f32 %v2349, %v2389
        %v2391 = vpop.f32.mrf.mxu0
        %v2392 = vadd.f32 %v2349, %v2391
        %2393 = vmatmul.bf16.gmra.mxu0 %v2370
        %v2394 = vpop.f32.mrf.mxu0
        %v2395 = vadd.f32 %v2349, %v2394
        %v2396 = vpop.f32.mrf.mxu0
        %v2397 = vadd.f32 %v2349, %v2396
        %2398 = vmatmul.bf16.gmra.mxu0 %v2373
        %v2399 = vpop.f32.mrf.mxu0
        %v2400 = vadd.f32 %v2349, %v2399
        %v2401 = vpop.f32.mrf.mxu0
        %v2402 = vadd.f32 %v2349, %v2401
        %2403 = vdwg.mxu0
        %v2404 = vmul.f32 %v2385, 0.5
        %v2405 = vmul.f32 %v2387, 0.5
        %v2406 = vmul.f32 %v2390, 0.5
        %v2407 = vmul.f32 %v2392, 0.5
        %v2408 = vmul.f32 %v2395, 0.5
        %v2409 = vmul.f32 %v2397, 0.5
        %v2410 = vmul.f32 %v2400, 0.5
        %v2411 = vmul.f32 %v2402, 0.5
        %v2412 = vmul.f32 %v2385, 0.70710677
        %v2413 = vmul.f32 %v2387, 0.70710677
        %v2414 = vmul.f32 %v2390, 0.70710677
        %v2415 = vmul.f32 %v2392, 0.70710677
        %v2416 = vmul.f32 %v2395, 0.70710677
        %v2417 = vmul.f32 %v2397, 0.70710677
        %v2418 = vmul.f32 %v2400, 0.70710677
        %v2419 = vmul.f32 %v2402, 0.70710677
        %v2420 = vmul.f32 %v2412, %v2412
        %v2421 = vmin.f32 16.0, %v2420
        %v2422 = vmul.f32 %v2421, 2.1237322e-06
        %v2423 = vadd.f32 %v2422, 0.00028619796
        %v2424 = vmul.f32 %v2421, %v2423
        %v2425 = vadd.f32 %v2424, 0.0036580483
        %v2426 = vmul.f32 %v2421, %v2425
        %v2427 = vadd.f32 %v2426, 0.05243302
        %v2428 = vmul.f32 %v2421, %v2427
        %v2429 = vadd.f32 %v2428, 0.18741608
        %v2430 = vmul.f32 %v2421, %v2429
        %v2431 = vadd.f32 %v2430, 1.1283791
        %v2432 = vmul.f32 %v2412, %v2431
        %v2433 = vmul.f32 %v2421, 3.8918573e-05
        %v2434 = vadd.f32 %v2433, 0.001143296
        %v2435 = vmul.f32 %v2421, %v2434
        %v2436 = vadd.f32 %v2435, 0.014752088
        %v2437 = vmul.f32 %v2421, %v2436
        %v2438 = vadd.f32 %v2437, 0.112945676
        %v2439 = vmul.f32 %v2421, %v2438
        %v2440 = vadd.f32 %v2439, 0.4994258
        %v2441 = vmul.f32 %v2421, %v2440
        %v2442 = vadd.f32 %v2441, 1.0
        %v2443 = vrcp.pop %v2442
        %v2444 = vmul.f32 %v2442, %v2443
        %v2445 = vsub.f32 1.0, %v2444
        %v2446 = vmul.f32 %v2443, %v2445
        %v2447 = vadd.f32 %v2443, %v2446
        %vm2448 = vweird.f32 %v2442
        %vm2449 = vweird.f32 %v2443
        %vm2450 = vmor %vm2448, %vm2449
        %v2451 = vsel %vm2450, %v2443, %v2447
        %v2452 = vand.u32 2147483647, %v2442
        %vm2453 = vcmp.eq.f32.partialorder %v2452, 8.507059e+37
        %v2454 = vand.u32 %v2442, 2147483648
        %v2455 = vor.u32 1.1754944e-38, %v2454
        %v2456 = vsel %vm2453, %v2455, %v2451
        %v2457 = vmul.f32 %v2432, %v2456
        %v2458 = vmin.f32 %v2457, 1.0
        %v2459 = vmax.f32 %v2458, -1.0
        %v2460 = vmul.f32 %v2413, %v2413
        %v2461 = vmin.f32 16.0, %v2460
        %v2462 = vmul.f32 %v2461, 2.1237322e-06
        %v2463 = vadd.f32 %v2462, 0.00028619796
        %v2464 = vmul.f32 %v2461, %v2463
        %v2465 = vadd.f32 %v2464, 0.0036580483
        %v2466 = vmul.f32 %v2461, %v2465
        %v2467 = vadd.f32 %v2466, 0.05243302
        %v2468 = vmul.f32 %v2461, %v2467
        %v2469 = vadd.f32 %v2468, 0.18741608
        %v2470 = vmul.f32 %v2461, %v2469
        %v2471 = vadd.f32 %v2470, 1.1283791
        %v2472 = vmul.f32 %v2413, %v2471
        %v2473 = vmul.f32 %v2461, 3.8918573e-05
        %v2474 = vadd.f32 %v2473, 0.001143296
        %v2475 = vmul.f32 %v2461, %v2474
        %v2476 = vadd.f32 %v2475, 0.014752088
        %v2477 = vmul.f32 %v2461, %v2476
        %v2478 = vadd.f32 %v2477, 0.112945676
        %v2479 = vmul.f32 %v2461, %v2478
        %v2480 = vadd.f32 %v2479, 0.4994258
        %v2481 = vmul.f32 %v2461, %v2480
        %v2482 = vadd.f32 %v2481, 1.0
        %v2483 = vrcp.pop %v2482
        %v2484 = vmul.f32 %v2482, %v2483
        %v2485 = vsub.f32 1.0, %v2484
        %v2486 = vmul.f32 %v2483, %v2485
        %v2487 = vadd.f32 %v2483, %v2486
        %vm2488 = vweird.f32 %v2482
        %vm2489 = vweird.f32 %v2483
        %vm2490 = vmor %vm2488, %vm2489
        %v2491 = vsel %vm2490, %v2483, %v2487
        %v2492 = vand.u32 2147483647, %v2482
        %vm2493 = vcmp.eq.f32.partialorder %v2492, 8.507059e+37
        %v2494 = vand.u32 %v2482, 2147483648
        %v2495 = vor.u32 1.1754944e-38, %v2494
        %v2496 = vsel %vm2493, %v2495, %v2491
        %v2497 = vmul.f32 %v2472, %v2496
        %v2498 = vmin.f32 %v2497, 1.0
        %v2499 = vmax.f32 %v2498, -1.0
        %v2500 = vmul.f32 %v2414, %v2414
        %v2501 = vmin.f32 16.0, %v2500
        %v2502 = vmul.f32 %v2501, 2.1237322e-06
        %v2503 = vadd.f32 %v2502, 0.00028619796
        %v2504 = vmul.f32 %v2501, %v2503
        %v2505 = vadd.f32 %v2504, 0.0036580483
        %v2506 = vmul.f32 %v2501, %v2505
        %v2507 = vadd.f32 %v2506, 0.05243302
        %v2508 = vmul.f32 %v2501, %v2507
        %v2509 = vadd.f32 %v2508, 0.18741608
        %v2510 = vmul.f32 %v2501, %v2509
        %v2511 = vadd.f32 %v2510, 1.1283791
        %v2512 = vmul.f32 %v2414, %v2511
        %v2513 = vmul.f32 %v2501, 3.8918573e-05
        %v2514 = vadd.f32 %v2513, 0.001143296
        %v2515 = vmul.f32 %v2501, %v2514
        %v2516 = vadd.f32 %v2515, 0.014752088
        %v2517 = vmul.f32 %v2501, %v2516
        %v2518 = vadd.f32 %v2517, 0.112945676
        %v2519 = vmul.f32 %v2501, %v2518
        %v2520 = vadd.f32 %v2519, 0.4994258
        %v2521 = vmul.f32 %v2501, %v2520
        %v2522 = vadd.f32 %v2521, 1.0
        %v2523 = vrcp.pop %v2522
        %v2524 = vmul.f32 %v2522, %v2523
        %v2525 = vsub.f32 1.0, %v2524
        %v2526 = vmul.f32 %v2523, %v2525
        %v2527 = vadd.f32 %v2523, %v2526
        %vm2528 = vweird.f32 %v2522
        %vm2529 = vweird.f32 %v2523
        %vm2530 = vmor %vm2528, %vm2529
        %v2531 = vsel %vm2530, %v2523, %v2527
        %v2532 = vand.u32 2147483647, %v2522
        %vm2533 = vcmp.eq.f32.partialorder %v2532, 8.507059e+37
        %v2534 = vand.u32 %v2522, 2147483648
        %v2535 = vor.u32 1.1754944e-38, %v2534
        %v2536 = vsel %vm2533, %v2535, %v2531
        %v2537 = vmul.f32 %v2512, %v2536
        %v2538 = vmin.f32 %v2537, 1.0
        %v2539 = vmax.f32 %v2538, -1.0
        %v2540 = vmul.f32 %v2415, %v2415
        %v2541 = vmin.f32 16.0, %v2540
        %v2542 = vmul.f32 %v2541, 2.1237322e-06
        %v2543 = vadd.f32 %v2542, 0.00028619796
        %v2544 = vmul.f32 %v2541, %v2543
        %v2545 = vadd.f32 %v2544, 0.0036580483
        %v2546 = vmul.f32 %v2541, %v2545
        %v2547 = vadd.f32 %v2546, 0.05243302
        %v2548 = vmul.f32 %v2541, %v2547
        %v2549 = vadd.f32 %v2548, 0.18741608
        %v2550 = vmul.f32 %v2541, %v2549
        %v2551 = vadd.f32 %v2550, 1.1283791
        %v2552 = vmul.f32 %v2415, %v2551
        %v2553 = vmul.f32 %v2541, 3.8918573e-05
        %v2554 = vadd.f32 %v2553, 0.001143296
        %v2555 = vmul.f32 %v2541, %v2554
        %v2556 = vadd.f32 %v2555, 0.014752088
        %v2557 = vmul.f32 %v2541, %v2556
        %v2558 = vadd.f32 %v2557, 0.112945676
        %v2559 = vmul.f32 %v2541, %v2558
        %v2560 = vadd.f32 %v2559, 0.4994258
        %v2561 = vmul.f32 %v2541, %v2560
        %v2562 = vadd.f32 %v2561, 1.0
        %v2563 = vrcp.pop %v2562
        %v2564 = vmul.f32 %v2562, %v2563
        %v2565 = vsub.f32 1.0, %v2564
        %v2566 = vmul.f32 %v2563, %v2565
        %v2567 = vadd.f32 %v2563, %v2566
        %vm2568 = vweird.f32 %v2562
        %vm2569 = vweird.f32 %v2563
        %vm2570 = vmor %vm2568, %vm2569
        %v2571 = vsel %vm2570, %v2563, %v2567
        %v2572 = vand.u32 2147483647, %v2562
        %vm2573 = vcmp.eq.f32.partialorder %v2572, 8.507059e+37
        %v2574 = vand.u32 %v2562, 2147483648
        %v2575 = vor.u32 1.1754944e-38, %v2574
        %v2576 = vsel %vm2573, %v2575, %v2571
        %v2577 = vmul.f32 %v2552, %v2576
        %v2578 = vmin.f32 %v2577, 1.0
        %v2579 = vmax.f32 %v2578, -1.0
        %v2580 = vmul.f32 %v2416, %v2416
        %v2581 = vmin.f32 16.0, %v2580
        %v2582 = vmul.f32 %v2581, 2.1237322e-06
        %v2583 = vadd.f32 %v2582, 0.00028619796
        %v2584 = vmul.f32 %v2581, %v2583
        %v2585 = vadd.f32 %v2584, 0.0036580483
        %v2586 = vmul.f32 %v2581, %v2585
        %v2587 = vadd.f32 %v2586, 0.05243302
        %v2588 = vmul.f32 %v2581, %v2587
        %v2589 = vadd.f32 %v2588, 0.18741608
        %v2590 = vmul.f32 %v2581, %v2589
        %v2591 = vadd.f32 %v2590, 1.1283791
        %v2592 = vmul.f32 %v2416, %v2591
        %v2593 = vmul.f32 %v2581, 3.8918573e-05
        %v2594 = vadd.f32 %v2593, 0.001143296
        %v2595 = vmul.f32 %v2581, %v2594
        %v2596 = vadd.f32 %v2595, 0.014752088
        %v2597 = vmul.f32 %v2581, %v2596
        %v2598 = vadd.f32 %v2597, 0.112945676
        %v2599 = vmul.f32 %v2581, %v2598
        %v2600 = vadd.f32 %v2599, 0.4994258
        %v2601 = vmul.f32 %v2581, %v2600
        %v2602 = vadd.f32 %v2601, 1.0
        %v2603 = vrcp.pop %v2602
        %v2604 = vmul.f32 %v2602, %v2603
        %v2605 = vsub.f32 1.0, %v2604
        %v2606 = vmul.f32 %v2603, %v2605
        %v2607 = vadd.f32 %v2603, %v2606
        %vm2608 = vweird.f32 %v2602
        %vm2609 = vweird.f32 %v2603
        %vm2610 = vmor %vm2608, %vm2609
        %v2611 = vsel %vm2610, %v2603, %v2607
        %v2612 = vand.u32 2147483647, %v2602
        %vm2613 = vcmp.eq.f32.partialorder %v2612, 8.507059e+37
        %v2614 = vand.u32 %v2602, 2147483648
        %v2615 = vor.u32 1.1754944e-38, %v2614
        %v2616 = vsel %vm2613, %v2615, %v2611
        %v2617 = vmul.f32 %v2592, %v2616
        %v2618 = vmin.f32 %v2617, 1.0
        %v2619 = vmax.f32 %v2618, -1.0
        %v2620 = vmul.f32 %v2417, %v2417
        %v2621 = vmin.f32 16.0, %v2620
        %v2622 = vmul.f32 %v2621, 2.1237322e-06
        %v2623 = vadd.f32 %v2622, 0.00028619796
        %v2624 = vmul.f32 %v2621, %v2623
        %v2625 = vadd.f32 %v2624, 0.0036580483
        %v2626 = vmul.f32 %v2621, %v2625
        %v2627 = vadd.f32 %v2626, 0.05243302
        %v2628 = vmul.f32 %v2621, %v2627
        %v2629 = vadd.f32 %v2628, 0.18741608
        %v2630 = vmul.f32 %v2621, %v2629
        %v2631 = vadd.f32 %v2630, 1.1283791
        %v2632 = vmul.f32 %v2417, %v2631
        %v2633 = vmul.f32 %v2621, 3.8918573e-05
        %v2634 = vadd.f32 %v2633, 0.001143296
        %v2635 = vmul.f32 %v2621, %v2634
        %v2636 = vadd.f32 %v2635, 0.014752088
        %v2637 = vmul.f32 %v2621, %v2636
        %v2638 = vadd.f32 %v2637, 0.112945676
        %v2639 = vmul.f32 %v2621, %v2638
        %v2640 = vadd.f32 %v2639, 0.4994258
        %v2641 = vmul.f32 %v2621, %v2640
        %v2642 = vadd.f32 %v2641, 1.0
        %v2643 = vrcp.pop %v2642
        %v2644 = vmul.f32 %v2642, %v2643
        %v2645 = vsub.f32 1.0, %v2644
        %v2646 = vmul.f32 %v2643, %v2645
        %v2647 = vadd.f32 %v2643, %v2646
        %vm2648 = vweird.f32 %v2642
        %vm2649 = vweird.f32 %v2643
        %vm2650 = vmor %vm2648, %vm2649
        %v2651 = vsel %vm2650, %v2643, %v2647
        %v2652 = vand.u32 2147483647, %v2642
        %vm2653 = vcmp.eq.f32.partialorder %v2652, 8.507059e+37
        %v2654 = vand.u32 %v2642, 2147483648
        %v2655 = vor.u32 1.1754944e-38, %v2654
        %v2656 = vsel %vm2653, %v2655, %v2651
        %v2657 = vmul.f32 %v2632, %v2656
        %v2658 = vmin.f32 %v2657, 1.0
        %v2659 = vmax.f32 %v2658, -1.0
        %v2660 = vmul.f32 %v2418, %v2418
        %v2661 = vmin.f32 16.0, %v2660
        %v2662 = vmul.f32 %v2661, 2.1237322e-06
        %v2663 = vadd.f32 %v2662, 0.00028619796
        %v2664 = vmul.f32 %v2661, %v2663
        %v2665 = vadd.f32 %v2664, 0.0036580483
        %v2666 = vmul.f32 %v2661, %v2665
        %v2667 = vadd.f32 %v2666, 0.05243302
        %v2668 = vmul.f32 %v2661, %v2667
        %v2669 = vadd.f32 %v2668, 0.18741608
        %v2670 = vmul.f32 %v2661, %v2669
        %v2671 = vadd.f32 %v2670, 1.1283791
        %v2672 = vmul.f32 %v2418, %v2671
        %v2673 = vmul.f32 %v2661, 3.8918573e-05
        %v2674 = vadd.f32 %v2673, 0.001143296
        %v2675 = vmul.f32 %v2661, %v2674
        %v2676 = vadd.f32 %v2675, 0.014752088
        %v2677 = vmul.f32 %v2661, %v2676
        %v2678 = vadd.f32 %v2677, 0.112945676
        %v2679 = vmul.f32 %v2661, %v2678
        %v2680 = vadd.f32 %v2679, 0.4994258
        %v2681 = vmul.f32 %v2661, %v2680
        %v2682 = vadd.f32 %v2681, 1.0
        %v2683 = vrcp.pop %v2682
        %v2684 = vmul.f32 %v2682, %v2683
        %v2685 = vsub.f32 1.0, %v2684
        %v2686 = vmul.f32 %v2683, %v2685
        %v2687 = vadd.f32 %v2683, %v2686
        %vm2688 = vweird.f32 %v2682
        %vm2689 = vweird.f32 %v2683
        %vm2690 = vmor %vm2688, %vm2689
        %v2691 = vsel %vm2690, %v2683, %v2687
        %v2692 = vand.u32 2147483647, %v2682
        %vm2693 = vcmp.eq.f32.partialorder %v2692, 8.507059e+37
        %v2694 = vand.u32 %v2682, 2147483648
        %v2695 = vor.u32 1.1754944e-38, %v2694
        %v2696 = vsel %vm2693, %v2695, %v2691
        %v2697 = vmul.f32 %v2672, %v2696
        %v2698 = vmin.f32 %v2697, 1.0
        %v2699 = vmax.f32 %v2698, -1.0
        %v2700 = vmul.f32 %v2419, %v2419
        %v2701 = vmin.f32 16.0, %v2700
        %v2702 = vmul.f32 %v2701, 2.1237322e-06
        %v2703 = vadd.f32 %v2702, 0.00028619796
        %v2704 = vmul.f32 %v2701, %v2703
        %v2705 = vadd.f32 %v2704, 0.0036580483
        %v2706 = vmul.f32 %v2701, %v2705
        %v2707 = vadd.f32 %v2706, 0.05243302
        %v2708 = vmul.f32 %v2701, %v2707
        %v2709 = vadd.f32 %v2708, 0.18741608
        %v2710 = vmul.f32 %v2701, %v2709
        %v2711 = vadd.f32 %v2710, 1.1283791
        %v2712 = vmul.f32 %v2419, %v2711
        %v2713 = vmul.f32 %v2701, 3.8918573e-05
        %v2714 = vadd.f32 %v2713, 0.001143296
        %v2715 = vmul.f32 %v2701, %v2714
        %v2716 = vadd.f32 %v2715, 0.014752088
        %v2717 = vmul.f32 %v2701, %v2716
        %v2718 = vadd.f32 %v2717, 0.112945676
        %v2719 = vmul.f32 %v2701, %v2718
        %v2720 = vadd.f32 %v2719, 0.4994258
        %v2721 = vmul.f32 %v2701, %v2720
        %v2722 = vadd.f32 %v2721, 1.0
        %v2723 = vrcp.pop %v2722
        %v2724 = vmul.f32 %v2722, %v2723
        %v2725 = vsub.f32 1.0, %v2724
        %v2726 = vmul.f32 %v2723, %v2725
        %v2727 = vadd.f32 %v2723, %v2726
        %vm2728 = vweird.f32 %v2722
        %vm2729 = vweird.f32 %v2723
        %vm2730 = vmor %vm2728, %vm2729
        %v2731 = vsel %vm2730, %v2723, %v2727
        %v2732 = vand.u32 2147483647, %v2722
        %vm2733 = vcmp.eq.f32.partialorder %v2732, 8.507059e+37
        %v2734 = vand.u32 %v2722, 2147483648
        %v2735 = vor.u32 1.1754944e-38, %v2734
        %v2736 = vsel %vm2733, %v2735, %v2731
        %v2737 = vmul.f32 %v2712, %v2736
        %v2738 = vmin.f32 %v2737, 1.0
        %v2739 = vmax.f32 %v2738, -1.0
        %v2740 = vadd.f32 %v2459, 1.0
        %v2741 = vadd.f32 %v2499, 1.0
        %v2742 = vadd.f32 %v2539, 1.0
        %v2743 = vadd.f32 %v2579, 1.0
        %v2744 = vadd.f32 %v2619, 1.0
        %v2745 = vadd.f32 %v2659, 1.0
        %v2746 = vadd.f32 %v2699, 1.0
        %v2747 = vadd.f32 %v2739, 1.0
        %v2748 = vmul.f32 %v2404, %v2740
        %v2749 = vmul.f32 %v2405, %v2741
        %v2750 = vmul.f32 %v2406, %v2742
        %v2751 = vmul.f32 %v2407, %v2743
        %v2752 = vmul.f32 %v2408, %v2744
        %v2753 = vmul.f32 %v2409, %v2745
        %v2754 = vmul.f32 %v2410, %v2746
        %v2755 = vmul.f32 %v2411, %v2747
        %v2756 = vpack.c.bf16 %v2749, %v2748
        %v2757 = vpack.c.bf16 %v2751, %v2750
        %v2758 = vpack.c.bf16 %v2753, %v2752
        %v2759 = vpack.c.bf16 %v2755, %v2754
        %v2760 = vld [vmem:[#allocation10] sm:$0xf]
        %v2761 = vld [vmem:[#allocation10 + $0x4] sm:$0xf]
        %v2762 = vld [vmem:[#allocation10 + $0x8] sm:$0xf]
        %v2763 = vld [vmem:[#allocation10 + $0xc] sm:$0xf]
        %v2764 = vld [vmem:[%s12] sm:$0x1]
        %v2766 = vperm.slane %v2764, 0
        %v2772 = vunpack.c.l.b16 %v2760
        %v2773 = vunpack.c.l.b16 %v2761
        %v2774 = vunpack.c.l.b16 %v2762
        %v2775 = vunpack.c.l.b16 %v2763
        %v2776 = vpack.c.b16 %v2773, %v2772
        %v2777 = vpack.c.b16 %v2775, %v2774
        %v2781 = vsel %vm566, %v2756, 0
        %v2784 = vsel %vm566, %v2757, 0
        %v2787 = vsel %vm566, %v2758, 0
        %v2790 = vsel %vm566, %v2759, 0
        %2792 = vmatpush.bf16.msra.mxu0 0
        %2793 = vmatpush.bf16.msra.mxu0 0
        %2794 = vmatpush.bf16.msra.mxu0 0
        %2795 = vmatpush.bf16.msra.mxu0 0
        %2796 = vmatpush.bf16.msra.mxu0 0
        %2797 = vmatpush.bf16.msra.mxu0 0
        %2798 = vmatpush.bf16.msra.mxu0 %v2777
        %2799 = vmatpush.bf16.msra.mxu0 %v2776
        %2800 = vmatmul.bf16.gmra.mxu0 %v2781
        %v2801 = vpop.f32.mrf.mxu0
        %v2802 = vadd.f32 %v2766, %v2801
        %v2803 = vpop.f32.mrf.mxu0
        %v2804 = vadd.f32 %v2766, %v2803
        %2805 = vmatmul.bf16.gmra.mxu0 %v2784
        %v2806 = vpop.f32.mrf.mxu0
        %v2807 = vadd.f32 %v2766, %v2806
        %v2808 = vpop.f32.mrf.mxu0
        %v2809 = vadd.f32 %v2766, %v2808
        %2810 = vmatmul.bf16.gmra.mxu0 %v2787
        %v2811 = vpop.f32.mrf.mxu0
        %v2812 = vadd.f32 %v2766, %v2811
        %v2813 = vpop.f32.mrf.mxu0
        %v2814 = vadd.f32 %v2766, %v2813
        %2815 = vmatmul.bf16.gmra.mxu0 %v2790
        %v2816 = vpop.f32.mrf.mxu0
        %v2817 = vadd.f32 %v2766, %v2816
        %v2818 = vpop.f32.mrf.mxu0
        %v2819 = vadd.f32 %v2766, %v2818
        %2820 = vdwg.mxu0
        %v2821 = vadd.f32 %v2802, %v2131
        %v2822 = vadd.f32 %v2804, %v2132
        %v2823 = vadd.f32 %v2807, %v2133
        %v2824 = vadd.f32 %v2809, %v2134
        %v2825 = vadd.f32 %v2812, %v2135
        %v2826 = vadd.f32 %v2814, %v2136
        %v2827 = vadd.f32 %v2817, %v2137
        %v2828 = vadd.f32 %v2819, %v2138
        %2829 = vxpose.xlu0.b32.start [1/16] %v2821, 128
        %2830 = vxpose.xlu0.b32.cont [2/16] %v2822, 128
        %2831 = vxpose.xlu0.b32.cont [3/16] %v2823, 128
        %2832 = vxpose.xlu0.b32.cont [4/16] %v2824, 128
        %2833 = vxpose.xlu0.b32.cont [5/16] %v2825, 128
        %2834 = vxpose.xlu0.b32.cont [6/16] %v2826, 128
        %2835 = vxpose.xlu0.b32.cont [7/16] %v2827, 128
        %2836 = vxpose.xlu0.b32.cont [8/16] %v2828, 128
        %2837 = vxpose.xlu0.b32.cont [9/16] 0.0, 128
        %2838 = vxpose.xlu0.b32.cont [10/16] 0.0, 128
        %2839 = vxpose.xlu0.b32.cont [11/16] 0.0, 128
        %2840 = vxpose.xlu0.b32.cont [12/16] 0.0, 128
        %2841 = vxpose.xlu0.b32.cont [13/16] 0.0, 128
        %2842 = vxpose.xlu0.b32.cont [14/16] 0.0, 128
        %2843 = vxpose.xlu0.b32.cont [15/16] 0.0, 128
        %2844 = vxpose.xlu0.b32.end [16/16] 0.0, 128
        %v2845 = vpop.trf.xlu0
        %v2846 = vpop.trf.xlu0
        %v2847 = vpop.trf.xlu0
        %v2848 = vpop.trf.xlu0
        %v2849 = vpop.trf.xlu0
        %v2850 = vpop.trf.xlu0
        %v2851 = vpop.trf.xlu0
        %v2852 = vpop.trf.xlu0
        %v2853 = vpop.trf.xlu0
        %v2854 = vpop.trf.xlu0
        %v2855 = vpop.trf.xlu0
        %v2856 = vpop.trf.xlu0
        %v2857 = vpop.trf.xlu0
        %v2858 = vpop.trf.xlu0
        %v2859 = vpop.trf.xlu0
        %v2860 = vpop.trf.xlu0
        %2861 = vst.msk [vmem:[%s526] sm:$0xff] %vm1267, %v2845
        %2862 = vst.msk [vmem:[%s526 + $0x8] sm:$0xff] %vm1267, %v2846
        %2863 = vst.msk [vmem:[%s526 + $0x10] sm:$0xff] %vm1267, %v2847
        %2864 = vst.msk [vmem:[%s526 + $0x18] sm:$0xff] %vm1267, %v2848
        %s2865 = sand.u32 %s318, 1
        %s2866 = scalar_lea.sflag [#allocation4], %s2865
        %s2867 = sand.u32 %s318, 1
        %s2868 = smul.addr %s2867, 32
        %s2869 = scalar_lea.vmem [#allocation11], %s2868
        // Predicated region
        $region93: #{tpu_custom_call.1} parent=71 // pred_check
          %p2870 = pneg %p328
        $region94: #{tpu_custom_call.1} parent=71 // pred_check_branch
          %2872 = sbr.rel (%p2870) target = $region96
        $region95: #{tpu_custom_call.1} parent=71 // pred_region
          %2874 = vsyncadd %s2866, 0
          %s2875 = smul.addr %s32, 4
          %s2876 = smul.addr %s2875, 8
          %s2877 = scalar_lea.hbm %s13, %s2876
          %s2878 = sshll.u32 %s2869, 4
          %s2879 = int_to_ptr.vmem [resolvable:$true] %s2878
          %s2880 = sshll.u32 %s2877, 4
          %s2881 = int_to_ptr.hbm [resolvable:$true] %s2880
          %2886 = dma.vmem_to_hbm [thread:$0]  %s2879, 512, %s2881, %s2866, 128, 128, 8
        $region96: #{tpu_custom_call.1} parent=71 // pred_fallthru
          _
      $region72: #{tpu_custom_call.1} parent=5 // pred_fallthru
        _
      %p2887 = scmp.le.s32.totalorder 2, %s27
      // Predicated region
      $region97: #{tpu_custom_call.1} parent=5 // pred_check
        %p2888 = pneg %p2887
      $region98: #{tpu_custom_call.1} parent=5 // pred_check_branch
        %2890 = sbr.rel (%p2888) target = $region100
      $region99: #{tpu_custom_call.1} parent=5 // pred_region
        %s2891 = ssub.s32 %s27, 2
        // Predicated region
        $region101: #{tpu_custom_call.1} parent=99 // pred_check
          %p2892 = pneg %p334
        $region102: #{tpu_custom_call.1} parent=99 // pred_check_branch
          %2894 = sbr.rel (%p2892) target = $region104
        $region103: #{tpu_custom_call.1} parent=99 // pred_region
          %s2895 = sand.u32 %s319, 1
          %s2896 = scalar_lea.sflag [#allocation4], %s2895
          %s2897 = sand.u32 %s319, 1
          %s2898 = smul.addr %s2897, 32
          %s2899 = scalar_lea.vmem [#allocation11], %s2898
          %2901 = dma.done %s2896, 512
        $region104: #{tpu_custom_call.1} parent=99 // pred_fallthru
          _
      $region100: #{tpu_custom_call.1} parent=5 // pred_fallthru
        _
    $region6: #{tpu_custom_call.1} parent=1 // loop_footer
      %s31 = sadd.s32 1, %s27
    $region7: #{tpu_custom_call.1} parent=1 // loop_footer_branch
      %26 = sbr.rel target = $region3
    $region8: #{tpu_custom_call.1} parent=1 // loop_exit
      _
    %2902 = vsyncpa [#allocation3], 1
    %s2903 = scalar_lea.sflag [#allocation3], 1
    %2904 = vsyncpa %s2903, 1
    %2905 = vsyncpa [#allocation6], 1
    %2906 = vsyncpa [#allocation9], 1
    %2907 = vsyncpa [#allocation4], 1
    %s2908 = scalar_lea.sflag [#allocation4], 1
    %2909 = vsyncpa %s2908, 1

</llo_original>
